<compile_context>
chip_gen: v7x
topology: tpu7x:2x2x1
jax: 0.10.0
libtpu: 0.0.40
codegen_flags: <defaults>
</compile_context>

<pallas_src>
import functools
import math

import jax
import jax.numpy as jnp
from jax.experimental import pallas as pl
from jax.experimental.pallas import tpu as pltpu


# ----------------------------------------------------------------------------
# fused forward kernel (whole problem fits comfortably in VMEM at these sizes)
# ----------------------------------------------------------------------------
def _grcn_fused_kernel(adj_ref, x_ref, wd1_ref, wd2_ref, w1_ref, b1_ref,
                       w2_ref, b2_ref, logits_ref, new_ref, final_ref, *, K):
    bf16 = jnp.bfloat16
    f32 = jnp.float32

    def symnorm(a):
        # Normalize(add_loop=False): D^-1/2 A D^-1/2 with a deg<=0 -> 0 guard.
        # A is symmetric at both call sites; the axis-0 reduce (mostly VPU
        # adds) is kept instead of a (N,1)->(1,N) relayout for lowering
        # robustness (review-sanctioned fallback).  rsqrt only ever sees a
        # clamped-positive value, so no inf/NaN is produced in the dead branch.
        deg_r = jnp.sum(a, axis=1, keepdims=True)        # (N, 1)
        deg_c = jnp.sum(a, axis=0, keepdims=True)        # (1, N)
        dinv_r = jnp.where(deg_r > 0.0,
                           jax.lax.rsqrt(jnp.maximum(deg_r, 1e-12)), 0.0)
        dinv_c = jnp.where(deg_c > 0.0,
                           jax.lax.rsqrt(jnp.maximum(deg_c, 1e-12)), 0.0)
        return a * dinv_r * dinv_c

    x = x_ref[...]                                       # (N, F) f32

    # --- _node_embeddings: normalize_a(Adj) + diag GCN (2 layers, tanh) ------
    # bf16 MXU operands, f32 accumulation; elementwise math stays f32.
    adj_norm = symnorm(adj_ref[...]).astype(bf16)        # (N, N) bf16
    h = jnp.dot(adj_norm, (x * wd1_ref[...]).astype(bf16),
                preferred_element_type=f32)              # layer 1
    h = jnp.tanh(h)
    emb = jnp.dot(adj_norm, (h * wd2_ref[...]).astype(bf16),
                  preferred_element_type=f32)            # layer 2; adj_norm dies

    # _normalize=True -> row L2 norm:  x / max(||x||, eps)  ==  x * rsqrt(ss)
    ss = jnp.sum(emb * emb, axis=-1, keepdims=True)
    emb = emb * jax.lax.rsqrt(jnp.maximum(ss, 1e-24))

    # --- cal_similarity_graph -------------------------------------------------
    # E[:, :F/2] E[:, :F/2]^T + E[:, F/2:] E[:, F/2:]^T == E E^T.
    # Kept in f32 so the top-K thresholds match the f32 reference numerics.
    dn = (((1,), (1,)), ((), ()))                        # contract feature dims
    sim = jax.lax.dot_general(emb, emb, dn, preferred_element_type=f32)

    # --- KNN(K): in-kernel K-th-largest-per-row threshold ---------------------
    # K unrolled passes of row-max + mask-out (XLU reduce + VPU select).
    # TODO(synk): under exact value ties this yields the K-th *distinct* value
    #             and the >=-threshold mask keeps ties (including negative
    #             similarities and the self-edge), which can differ from an
    #             exact sorted top-K index selection in the opengsl reference.
    work = sim
    thr = jnp.max(work, axis=1, keepdims=True)
    for _ in range(K - 1):
        work = jnp.where(work >= thr, -jnp.inf, work)
        thr = jnp.max(work, axis=1, keepdims=True)
    masked = jnp.where(sim >= thr, sim, 0.0)             # sim/work die here

    # --- Symmetry(1) + Interpolate(1,1) ---------------------------------------
    # Store adj_new, then rebuild adj_final from the refs so the two (N,N)
    # f32 arrays never coexist in vregs (cuts spill / vst-slot pressure).
    new_ref[...] = masked + masked.T
    final_ref[...] = new_ref[...] + adj_ref[...]

    # --- normalize fused adjacency + task GCN (2 layers) ----------------------
    adj_fn = symnorm(final_ref[...]).astype(bf16)        # re-read, short-lived

    h1 = jnp.dot(x.astype(bf16), w1_ref[...].astype(bf16),
                 preferred_element_type=f32)
    h1 = jnp.dot(adj_fn, h1.astype(bf16),
                 preferred_element_type=f32) + b1_ref[...]
    h1 = jnp.maximum(h1, 0.0)                            # ReLU (f32)

    h2 = jnp.dot(h1.astype(bf16), w2_ref[...].astype(bf16),
                 preferred_element_type=f32)
    logits_ref[...] = (jnp.dot(adj_fn, h2.astype(bf16),
                               preferred_element_type=f32) + b2_ref[...])


# ----------------------------------------------------------------------------
# GRCN forward
# ----------------------------------------------------------------------------
def grcn_forward(x, adj, params, K):
    N, F = x.shape
    H = params["w1"].shape[1]
    C = params["w2"].shape[1]
    f32 = jnp.float32

    # Lane-dense padding of the task-GCN feature dims (an (N, 8) output would
    # force masked vst.msk partial stores).  Padded weight/bias columns are
    # zero, so the padded h1/logits columns are exactly zero and slicing
    # afterwards is lossless.
    def pad128(d):
        return ((d + 127) // 128) * 128

    Hp, Cp = pad128(H), pad128(C)
    w1 = jnp.pad(params["w1"], ((0, 0), (0, Hp - H)))
    b1 = jnp.pad(params["b1"], ((0, 0), (0, Hp - H)))
    w2 = jnp.pad(params["w2"], ((0, Hp - H), (0, Cp - C)))
    b2 = jnp.pad(params["b2"], ((0, 0), (0, Cp - C)))

    args = (adj, x, params["wd1"], params["wd2"], w1, b1, w2, b2)

    out_shapes = (
        jax.ShapeDtypeStruct((N, Cp), f32),   # logits slab (lane-dense)
        jax.ShapeDtypeStruct((N, N), f32),    # adj_new
        jax.ShapeDtypeStruct((N, N), f32),    # adj_final
    )

    # No grid: single invocation, whole arrays resident in VMEM.
    in_specs = [pl.BlockSpec(memory_space=pltpu.MemorySpace.VMEM)
                for _ in args]
    out_specs = tuple(pl.BlockSpec(memory_space=pltpu.MemorySpace.VMEM)
                      for _ in out_shapes)

    # Advisory cost for XLA scheduling around the custom call.
    mm_flops = 3 * (2 * N * N * F)                       # diag l1, diag l2, sim
    mm_flops += 2 * N * F * Hp + 2 * N * N * Hp          # task layer 1
    mm_flops += 2 * N * Hp * Cp + 2 * N * N * Cp         # task layer 2
    elt_flops = 16 * N * N                               # norms / top-K / fuse
    in_bytes = sum(a.size * a.dtype.itemsize for a in args)
    out_bytes = sum(math.prod(o.shape) * 4 for o in out_shapes)
    cost = pl.CostEstimate(flops=mm_flops + elt_flops,
                           transcendentals=N * F + 5 * N,
                           bytes_accessed=in_bytes + out_bytes)

    logits_pad, adj_new, adj_final = pl.pallas_call(
        functools.partial(_grcn_fused_kernel, K=K),
        out_shape=out_shapes,
        in_specs=in_specs,
        out_specs=out_specs,
        compiler_params=pltpu.CompilerParams(
            vmem_limit_bytes=32 * 1024 * 1024),
        cost_estimate=cost,
    )(*args)

    return logits_pad[:, :C], {"new": adj_new, "final": adj_final}


# ----------------------------------------------------------------------------
# main
# ----------------------------------------------------------------------------
if __name__ == "__main__":
    N, F, H, C, K = 128, 64, 32, 8, 4

    key = jax.random.PRNGKey(0)
    kx, ka, kw1, kw2 = jax.random.split(key, 4)

    # node features
    x = jax.random.normal(kx, (N, F), dtype=jnp.float32)

    # sparse-ish symmetric binary adjacency, no self loops
    probs = jax.random.uniform(ka, (N, N))
    a = (probs < 0.06).astype(jnp.float32)
    adj = jnp.maximum(a, a.T) * (1.0 - jnp.eye(N, dtype=jnp.float32))

    # deterministic parameters
    params = {
        # GCNDiagEncoder: diagonal weights initialised to ones (as in opengsl)
        "wd1": jnp.ones((1, F), dtype=jnp.float32),
        "wd2": jnp.ones((1, F), dtype=jnp.float32),
        # task GCNEncoder: 2 layers, scaled-normal weights, zero bias
        "w1": jax.random.normal(kw1, (F, H), dtype=jnp.float32) * (1.0 / F**0.5),
        "b1": jnp.zeros((1, H), dtype=jnp.float32),
        "w2": jax.random.normal(kw2, (H, C), dtype=jnp.float32) * (1.0 / H**0.5),
        "b2": jnp.zeros((1, C), dtype=jnp.float32),
    }

    logits, adjs = jax.jit(functools.partial(grcn_forward, K=K))(x, adj, params)
    jax.block_until_ready((logits, adjs))

    assert logits.shape == (N, C)
    assert adjs["new"].shape == (N, N) and adjs["final"].shape == (N, N)
    assert bool(jnp.all(jnp.isfinite(logits)))
    assert bool(jnp.all(jnp.isfinite(adjs["final"])))
    print("KERNEL_OK")
</pallas_src>

<mosaic_0001>
module attributes {stable_mosaic.version = 11 : i64} {
  func.func @_grcn_fused_kernel(%arg0: memref<128x128xf32, #tpu.memory_space<vmem>>, %arg1: memref<128x64xf32, #tpu.memory_space<vmem>>, %arg2: memref<1x64xf32, #tpu.memory_space<vmem>>, %arg3: memref<1x64xf32, #tpu.memory_space<vmem>>, %arg4: memref<64x128xf32, #tpu.memory_space<vmem>>, %arg5: memref<1x128xf32, #tpu.memory_space<vmem>>, %arg6: memref<128x128xf32, #tpu.memory_space<vmem>>, %arg7: memref<1x128xf32, #tpu.memory_space<vmem>>, %arg8: memref<128x128xf32, #tpu.memory_space<vmem>>, %arg9: memref<128x128xf32, #tpu.memory_space<vmem>>, %arg10: memref<128x128xf32, #tpu.memory_space<vmem>>) attributes {dimension_semantics = [], scalar_prefetch = 0 : i64, scratch_operands = 0 : i64, tpu.core_type = #tpu.core_type<tc>} {
    %c0 = arith.constant 0 : index
    %c0_0 = arith.constant 0 : index
    %0 = vector.load %arg1[%c0, %c0_0] : memref<128x64xf32, #tpu.memory_space<vmem>>, vector<128x64xf32>
    %c0_1 = arith.constant 0 : index
    %c0_2 = arith.constant 0 : index
    %1 = vector.load %arg0[%c0_1, %c0_2] : memref<128x128xf32, #tpu.memory_space<vmem>>, vector<128x128xf32>
    %cst = arith.constant dense<0.000000e+00> : vector<128xf32>
    %2 = vector.multi_reduction <add>, %1, %cst [1] : vector<128x128xf32> to vector<128xf32>
    %3 = vector.shape_cast %2 : vector<128xf32> to vector<128x1xf32>
    %cst_3 = arith.constant dense<0.000000e+00> : vector<128xf32>
    %4 = vector.multi_reduction <add>, %1, %cst_3 [0] : vector<128x128xf32> to vector<128xf32>
    %5 = vector.shape_cast %4 : vector<128xf32> to vector<1x128xf32>
    %cst_4 = arith.constant 0.000000e+00 : f32
    %6 = vector.broadcast %cst_4 : f32 to vector<128x1xf32>
    %7 = arith.cmpf ogt, %3, %6 : vector<128x1xf32>
    %cst_5 = arith.constant 9.99999996E-13 : f32
    %8 = vector.broadcast %cst_5 : f32 to vector<128x1xf32>
    %9 = arith.maximumf %3, %8 : vector<128x1xf32>
    %10 = math.rsqrt %9 : vector<128x1xf32>
    %cst_6 = arith.constant 0.000000e+00 : f32
    %11 = vector.broadcast %cst_6 : f32 to vector<128x1xf32>
    %12 = arith.select %7, %10, %11 : vector<128x1xi1>, vector<128x1xf32>
    %cst_7 = arith.constant 0.000000e+00 : f32
    %13 = vector.broadcast %cst_7 : f32 to vector<1x128xf32>
    %14 = arith.cmpf ogt, %5, %13 : vector<1x128xf32>
    %cst_8 = arith.constant 9.99999996E-13 : f32
    %15 = vector.broadcast %cst_8 : f32 to vector<1x128xf32>
    %16 = arith.maximumf %5, %15 : vector<1x128xf32>
    %17 = math.rsqrt %16 : vector<1x128xf32>
    %cst_9 = arith.constant 0.000000e+00 : f32
    %18 = vector.broadcast %cst_9 : f32 to vector<1x128xf32>
    %19 = arith.select %14, %17, %18 : vector<1x128xi1>, vector<1x128xf32>
    %20 = vector.broadcast %12 : vector<128x1xf32> to vector<128x128xf32>
    %21 = arith.mulf %1, %20 : vector<128x128xf32>
    %22 = vector.broadcast %19 : vector<1x128xf32> to vector<128x128xf32>
    %23 = arith.mulf %21, %22 : vector<128x128xf32>
    %24 = arith.truncf %23 : vector<128x128xf32> to vector<128x128xbf16>
    %c0_10 = arith.constant 0 : index
    %c0_11 = arith.constant 0 : index
    %25 = vector.load %arg2[%c0_10, %c0_11] : memref<1x64xf32, #tpu.memory_space<vmem>>, vector<1x64xf32>
    %26 = vector.broadcast %25 : vector<1x64xf32> to vector<128x64xf32>
    %27 = arith.mulf %0, %26 : vector<128x64xf32>
    %28 = arith.truncf %27 : vector<128x64xf32> to vector<128x64xbf16>
    %cst_12 = arith.constant dense<0.000000e+00> : vector<128x64xf32>
    %29 = tpu.matmul %24, %28, %cst_12 {dimension_numbers = #tpu.dot_dimension_numbers<[1], [0], [0], [1], [0, 0, 1, 1], [], []>} : vector<128x128xbf16>, vector<128x64xbf16>, vector<128x64xf32> -> vector<128x64xf32>
    %30 = math.tanh %29 : vector<128x64xf32>
    %c0_13 = arith.constant 0 : index
    %c0_14 = arith.constant 0 : index
    %31 = vector.load %arg3[%c0_13, %c0_14] : memref<1x64xf32, #tpu.memory_space<vmem>>, vector<1x64xf32>
    %32 = vector.broadcast %31 : vector<1x64xf32> to vector<128x64xf32>
    %33 = arith.mulf %30, %32 : vector<128x64xf32>
    %34 = arith.truncf %33 : vector<128x64xf32> to vector<128x64xbf16>
    %cst_15 = arith.constant dense<0.000000e+00> : vector<128x64xf32>
    %35 = tpu.matmul %24, %34, %cst_15 {dimension_numbers = #tpu.dot_dimension_numbers<[1], [0], [0], [1], [0, 0, 1, 1], [], []>} : vector<128x128xbf16>, vector<128x64xbf16>, vector<128x64xf32> -> vector<128x64xf32>
    %36 = arith.mulf %35, %35 : vector<128x64xf32>
    %cst_16 = arith.constant dense<0.000000e+00> : vector<128xf32>
    %37 = vector.multi_reduction <add>, %36, %cst_16 [1] : vector<128x64xf32> to vector<128xf32>
    %38 = vector.shape_cast %37 : vector<128xf32> to vector<128x1xf32>
    %cst_17 = arith.constant 1.000000e-24 : f32
    %39 = vector.broadcast %cst_17 : f32 to vector<128x1xf32>
    %40 = arith.maximumf %38, %39 : vector<128x1xf32>
    %41 = math.rsqrt %40 : vector<128x1xf32>
    %42 = vector.broadcast %41 : vector<128x1xf32> to vector<128x64xf32>
    %43 = arith.mulf %35, %42 : vector<128x64xf32>
    %cst_18 = arith.constant dense<0.000000e+00> : vector<128x128xf32>
    %44 = tpu.matmul %43, %43, %cst_18 {dimension_numbers = #tpu.dot_dimension_numbers<[1], [1], [0], [0], [0, 0, 1, 0], [], []>} : vector<128x64xf32>, vector<128x64xf32>, vector<128x128xf32> -> vector<128x128xf32>
    %cst_19 = arith.constant dense<0xFF800000> : vector<128xf32>
    %45 = vector.multi_reduction <maximumf>, %44, %cst_19 [1] : vector<128x128xf32> to vector<128xf32>
    %46 = vector.shape_cast %45 : vector<128xf32> to vector<128x1xf32>
    %47 = vector.broadcast %46 : vector<128x1xf32> to vector<128x128xf32>
    %48 = arith.cmpf oge, %44, %47 : vector<128x128xf32>
    %cst_20 = arith.constant 0xFF800000 : f32
    %49 = vector.broadcast %cst_20 : f32 to vector<128x128xf32>
    %50 = arith.select %48, %49, %44 : vector<128x128xi1>, vector<128x128xf32>
    %cst_21 = arith.constant dense<0xFF800000> : vector<128xf32>
    %51 = vector.multi_reduction <maximumf>, %50, %cst_21 [1] : vector<128x128xf32> to vector<128xf32>
    %52 = vector.shape_cast %51 : vector<128xf32> to vector<128x1xf32>
    %53 = vector.broadcast %52 : vector<128x1xf32> to vector<128x128xf32>
    %54 = arith.cmpf oge, %50, %53 : vector<128x128xf32>
    %cst_22 = arith.constant 0xFF800000 : f32
    %55 = vector.broadcast %cst_22 : f32 to vector<128x128xf32>
    %56 = arith.select %54, %55, %50 : vector<128x128xi1>, vector<128x128xf32>
    %cst_23 = arith.constant dense<0xFF800000> : vector<128xf32>
    %57 = vector.multi_reduction <maximumf>, %56, %cst_23 [1] : vector<128x128xf32> to vector<128xf32>
    %58 = vector.shape_cast %57 : vector<128xf32> to vector<128x1xf32>
    %59 = vector.broadcast %58 : vector<128x1xf32> to vector<128x128xf32>
    %60 = arith.cmpf oge, %56, %59 : vector<128x128xf32>
    %cst_24 = arith.constant 0xFF800000 : f32
    %61 = vector.broadcast %cst_24 : f32 to vector<128x128xf32>
    %62 = arith.select %60, %61, %56 : vector<128x128xi1>, vector<128x128xf32>
    %cst_25 = arith.constant dense<0xFF800000> : vector<128xf32>
    %63 = vector.multi_reduction <maximumf>, %62, %cst_25 [1] : vector<128x128xf32> to vector<128xf32>
    %64 = vector.shape_cast %63 : vector<128xf32> to vector<128x1xf32>
    %65 = vector.broadcast %64 : vector<128x1xf32> to vector<128x128xf32>
    %66 = arith.cmpf oge, %44, %65 : vector<128x128xf32>
    %cst_26 = arith.constant 0.000000e+00 : f32
    %67 = vector.broadcast %cst_26 : f32 to vector<128x128xf32>
    %68 = arith.select %66, %44, %67 : vector<128x128xi1>, vector<128x128xf32>
    %69 = tpu.transpose %68, [1, 0] : vector<128x128xf32> -> vector<128x128xf32>
    %70 = arith.addf %68, %69 : vector<128x128xf32>
    %c0_27 = arith.constant 0 : index
    %c0_28 = arith.constant 0 : index
    %71 = vector.load %arg9[%c0_27, %c0_28] : memref<128x128xf32, #tpu.memory_space<vmem>>, vector<128x128xf32>
    tpu.vector_store %arg9[%c0_27, %c0_28], %70 {strides = array<i32>} : memref<128x128xf32, #tpu.memory_space<vmem>>, vector<128x128xf32>,
    %c0_29 = arith.constant 0 : index
    %c0_30 = arith.constant 0 : index
    %72 = vector.load %arg9[%c0_29, %c0_30] : memref<128x128xf32, #tpu.memory_space<vmem>>, vector<128x128xf32>
    %c0_31 = arith.constant 0 : index
    %c0_32 = arith.constant 0 : index
    %73 = vector.load %arg0[%c0_31, %c0_32] : memref<128x128xf32, #tpu.memory_space<vmem>>, vector<128x128xf32>
    %74 = arith.addf %72, %73 : vector<128x128xf32>
    %c0_33 = arith.constant 0 : index
    %c0_34 = arith.constant 0 : index
    %75 = vector.load %arg10[%c0_33, %c0_34] : memref<128x128xf32, #tpu.memory_space<vmem>>, vector<128x128xf32>
    tpu.vector_store %arg10[%c0_33, %c0_34], %74 {strides = array<i32>} : memref<128x128xf32, #tpu.memory_space<vmem>>, vector<128x128xf32>,
    %c0_35 = arith.constant 0 : index
    %c0_36 = arith.constant 0 : index
    %76 = vector.load %arg10[%c0_35, %c0_36] : memref<128x128xf32, #tpu.memory_space<vmem>>, vector<128x128xf32>
    %cst_37 = arith.constant dense<0.000000e+00> : vector<128xf32>
    %77 = vector.multi_reduction <add>, %76, %cst_37 [1] : vector<128x128xf32> to vector<128xf32>
    %78 = vector.shape_cast %77 : vector<128xf32> to vector<128x1xf32>
    %cst_38 = arith.constant dense<0.000000e+00> : vector<128xf32>
    %79 = vector.multi_reduction <add>, %76, %cst_38 [0] : vector<128x128xf32> to vector<128xf32>
    %80 = vector.shape_cast %79 : vector<128xf32> to vector<1x128xf32>
    %cst_39 = arith.constant 0.000000e+00 : f32
    %81 = vector.broadcast %cst_39 : f32 to vector<128x1xf32>
    %82 = arith.cmpf ogt, %78, %81 : vector<128x1xf32>
    %cst_40 = arith.constant 9.99999996E-13 : f32
    %83 = vector.broadcast %cst_40 : f32 to vector<128x1xf32>
    %84 = arith.maximumf %78, %83 : vector<128x1xf32>
    %85 = math.rsqrt %84 : vector<128x1xf32>
    %cst_41 = arith.constant 0.000000e+00 : f32
    %86 = vector.broadcast %cst_41 : f32 to vector<128x1xf32>
    %87 = arith.select %82, %85, %86 : vector<128x1xi1>, vector<128x1xf32>
    %cst_42 = arith.constant 0.000000e+00 : f32
    %88 = vector.broadcast %cst_42 : f32 to vector<1x128xf32>
    %89 = arith.cmpf ogt, %80, %88 : vector<1x128xf32>
    %cst_43 = arith.constant 9.99999996E-13 : f32
    %90 = vector.broadcast %cst_43 : f32 to vector<1x128xf32>
    %91 = arith.maximumf %80, %90 : vector<1x128xf32>
    %92 = math.rsqrt %91 : vector<1x128xf32>
    %cst_44 = arith.constant 0.000000e+00 : f32
    %93 = vector.broadcast %cst_44 : f32 to vector<1x128xf32>
    %94 = arith.select %89, %92, %93 : vector<1x128xi1>, vector<1x128xf32>
    %95 = vector.broadcast %87 : vector<128x1xf32> to vector<128x128xf32>
    %96 = arith.mulf %76, %95 : vector<128x128xf32>
    %97 = vector.broadcast %94 : vector<1x128xf32> to vector<128x128xf32>
    %98 = arith.mulf %96, %97 : vector<128x128xf32>
    %99 = arith.truncf %98 : vector<128x128xf32> to vector<128x128xbf16>
    %100 = arith.truncf %0 : vector<128x64xf32> to vector<128x64xbf16>
    %c0_45 = arith.constant 0 : index
    %c0_46 = arith.constant 0 : index
    %101 = vector.load %arg4[%c0_45, %c0_46] : memref<64x128xf32, #tpu.memory_space<vmem>>, vector<64x128xf32>
    %102 = arith.truncf %101 : vector<64x128xf32> to vector<64x128xbf16>
    %cst_47 = arith.constant dense<0.000000e+00> : vector<128x128xf32>
    %103 = tpu.matmul %100, %102, %cst_47 {dimension_numbers = #tpu.dot_dimension_numbers<[1], [0], [0], [1], [0, 0, 1, 1], [], []>} : vector<128x64xbf16>, vector<64x128xbf16>, vector<128x128xf32> -> vector<128x128xf32>
    %104 = arith.truncf %103 : vector<128x128xf32> to vector<128x128xbf16>
    %cst_48 = arith.constant dense<0.000000e+00> : vector<128x128xf32>
    %105 = tpu.matmul %99, %104, %cst_48 {dimension_numbers = #tpu.dot_dimension_numbers<[1], [0], [0], [1], [0, 0, 1, 1], [], []>} : vector<128x128xbf16>, vector<128x128xbf16>, vector<128x128xf32> -> vector<128x128xf32>
    %c0_49 = arith.constant 0 : index
    %c0_50 = arith.constant 0 : index
    %106 = vector.load %arg5[%c0_49, %c0_50] : memref<1x128xf32, #tpu.memory_space<vmem>>, vector<1x128xf32>
    %107 = vector.broadcast %106 : vector<1x128xf32> to vector<128x128xf32>
    %108 = arith.addf %105, %107 : vector<128x128xf32>
    %cst_51 = arith.constant 0.000000e+00 : f32
    %109 = vector.broadcast %cst_51 : f32 to vector<128x128xf32>
    %110 = arith.maximumf %108, %109 : vector<128x128xf32>
    %111 = arith.truncf %110 : vector<128x128xf32> to vector<128x128xbf16>
    %c0_52 = arith.constant 0 : index
    %c0_53 = arith.constant 0 : index
    %112 = vector.load %arg6[%c0_52, %c0_53] : memref<128x128xf32, #tpu.memory_space<vmem>>, vector<128x128xf32>
    %113 = arith.truncf %112 : vector<128x128xf32> to vector<128x128xbf16>
    %cst_54 = arith.constant dense<0.000000e+00> : vector<128x128xf32>
    %114 = tpu.matmul %111, %113, %cst_54 {dimension_numbers = #tpu.dot_dimension_numbers<[1], [0], [0], [1], [0, 0, 1, 1], [], []>} : vector<128x128xbf16>, vector<128x128xbf16>, vector<128x128xf32> -> vector<128x128xf32>
    %115 = arith.truncf %114 : vector<128x128xf32> to vector<128x128xbf16>
    %cst_55 = arith.constant dense<0.000000e+00> : vector<128x128xf32>
    %116 = tpu.matmul %99, %115, %cst_55 {dimension_numbers = #tpu.dot_dimension_numbers<[1], [0], [0], [1], [0, 0, 1, 1], [], []>} : vector<128x128xbf16>, vector<128x128xbf16>, vector<128x128xf32> -> vector<128x128xf32>
    %c0_56 = arith.constant 0 : index
    %c0_57 = arith.constant 0 : index
    %117 = vector.load %arg7[%c0_56, %c0_57] : memref<1x128xf32, #tpu.memory_space<vmem>>, vector<1x128xf32>
    %118 = vector.broadcast %117 : vector<1x128xf32> to vector<128x128xf32>
    %119 = arith.addf %116, %118 : vector<128x128xf32>
    %c0_58 = arith.constant 0 : index
    %c0_59 = arith.constant 0 : index
    %120 = vector.load %arg8[%c0_58, %c0_59] : memref<128x128xf32, #tpu.memory_space<vmem>>, vector<128x128xf32>
    tpu.vector_store %arg8[%c0_58, %c0_59], %119 {strides = array<i32>} : memref<128x128xf32, #tpu.memory_space<vmem>>, vector<128x128xf32>,
    return
  }
}

</mosaic_0001>

<llo_original>
// kernel: grcn_forward.1
$region0: #{grcn_forward.1}
  #allocation0 [shape = 'u32[]', space=smem, size = 0x4, offset = 0x4, fixed_abs, tag = 'smem constant byte address 0x4 - core index']
  #allocation1 [shape = 'u32[144,128]{1,0:T(1,128)}', space=vmem, size = 0x12000, scoped, tag = 'internal scratch']
  %s0 = inlined_call_operand.vmem [shape: f32[128,128], index: 0, kind: input, shape index: {}]
  %s1 = inlined_call_operand.vmem [shape: f32[128,64], index: 1, kind: input, shape index: {}]
  %s2 = inlined_call_operand.vmem [shape: f32[1,64], index: 2, kind: input, shape index: {}]
  %s3 = inlined_call_operand.vmem [shape: f32[1,64], index: 3, kind: input, shape index: {}]
  %s4 = inlined_call_operand.vmem [shape: f32[64,128], index: 4, kind: input, shape index: {}]
  %s5 = inlined_call_operand.vmem [shape: f32[1,128], index: 5, kind: input, shape index: {}]
  %s6 = inlined_call_operand.vmem [shape: f32[128,128], index: 6, kind: input, shape index: {}]
  %s7 = inlined_call_operand.vmem [shape: f32[1,128], index: 7, kind: input, shape index: {}]
  %s8 = inlined_call_operand.vmem [shape: f32[128,128], index: 8, kind: output, shape index: {0}]
  %s9 = inlined_call_operand.hbm [shape: f32[128,128], index: 9, kind: output, shape index: {1}]
  %s10 = inlined_call_operand.hbm [shape: f32[128,128], index: 10, kind: output, shape index: {2}]
  %11 = xla_tuple %s8, %s9, %s10
  %s12 = sld [smem:[#allocation0]]
  $region58: #{grcn_forward.1} parent=0
    _
  %s14 = ssub.s32 1, %s12
  %s15 = scalar_select 0, %s14, %s12
  $region1: #{grcn_forward.1} parent=0
    #allocation2 [shape = 'u8[65536]{0}', space=vmem, size = 0x10000, scoped, tag = 'output window, operand 1, single buffered']
    #allocation3 [shape = 's32[1]{0}', space=sflag, size = 0x4, scoped, tag = 'scoped memory for grcn_forward.1']
    #allocation4 [shape = 'u8[65536]{0}', space=vmem, size = 0x10000, scoped, tag = 'output window, operand 2, single buffered']
    #allocation5 [shape = 's32[1]{0}', space=sflag, size = 0x4, scoped, tag = 'scoped memory for grcn_forward.1']
    %16 = vsyncpa [#allocation3], 0
    %17 = vsyncpa [#allocation5], 0
    // Predicated region
    $region2: #{grcn_forward.1} parent=1 // pred_check
      _
    $region3: #{grcn_forward.1} parent=1 // pred_check_branch
      %19 = sbr.rel (0) target = $region5
    $region4: #{grcn_forward.1} parent=1 // pred_region
      _
    $region5: #{grcn_forward.1} parent=1 // pred_fallthru
      _
    // Predicated region
    $region6: #{grcn_forward.1} parent=1 // pred_check
      _
    $region7: #{grcn_forward.1} parent=1 // pred_check_branch
      %21 = sbr.rel (0) target = $region9
    $region8: #{grcn_forward.1} parent=1 // pred_region
      _
    $region9: #{grcn_forward.1} parent=1 // pred_fallthru
      _
    // Predicated region
    $region10: #{grcn_forward.1} parent=1 // pred_check
      _
    $region11: #{grcn_forward.1} parent=1 // pred_check_branch
      %23 = sbr.rel (0) target = $region13
    $region12: #{grcn_forward.1} parent=1 // pred_region
      _
    $region13: #{grcn_forward.1} parent=1 // pred_fallthru
      _
    // Predicated region
    $region14: #{grcn_forward.1} parent=1 // pred_check
      _
    $region15: #{grcn_forward.1} parent=1 // pred_check_branch
      %25 = sbr.rel (0) target = $region17
    $region16: #{grcn_forward.1} parent=1 // pred_region
      _
    $region17: #{grcn_forward.1} parent=1 // pred_fallthru
      _
    // Predicated region
    $region18: #{grcn_forward.1} parent=1 // pred_check
      _
    $region19: #{grcn_forward.1} parent=1 // pred_check_branch
      %27 = sbr.rel (0) target = $region21
    $region20: #{grcn_forward.1} parent=1 // pred_region
      _
    $region21: #{grcn_forward.1} parent=1 // pred_fallthru
      _
    // Predicated region
    $region22: #{grcn_forward.1} parent=1 // pred_check
      _
    $region23: #{grcn_forward.1} parent=1 // pred_check_branch
      %29 = sbr.rel (0) target = $region25
    $region24: #{grcn_forward.1} parent=1 // pred_region
      _
    $region25: #{grcn_forward.1} parent=1 // pred_fallthru
      _
    // Predicated region
    $region26: #{grcn_forward.1} parent=1 // pred_check
      _
    $region27: #{grcn_forward.1} parent=1 // pred_check_branch
      %31 = sbr.rel (0) target = $region29
    $region28: #{grcn_forward.1} parent=1 // pred_region
      _
    $region29: #{grcn_forward.1} parent=1 // pred_fallthru
      _
    // Predicated region
    $region30: #{grcn_forward.1} parent=1 // pred_check
      _
    $region31: #{grcn_forward.1} parent=1 // pred_check_branch
      %33 = sbr.rel (0) target = $region33
    $region32: #{grcn_forward.1} parent=1 // pred_region
      _
    $region33: #{grcn_forward.1} parent=1 // pred_fallthru
      _
    %v35 = vld [vmem:[%s1] sm:$0xff]
    %v36 = vld [vmem:[%s1 + $0x8] sm:$0xff]
    %v37 = vld [vmem:[%s1 + $0x10] sm:$0xff]
    %v38 = vld [vmem:[%s1 + $0x18] sm:$0xff]
    %v39 = vld [vmem:[%s1 + $0x20] sm:$0xff]
    %v40 = vld [vmem:[%s1 + $0x28] sm:$0xff]
    %v41 = vld [vmem:[%s1 + $0x30] sm:$0xff]
    %v42 = vld [vmem:[%s1 + $0x38] sm:$0xff]
    %v43 = vld [vmem:[%s1 + $0x40] sm:$0xff]
    %v44 = vld [vmem:[%s1 + $0x48] sm:$0xff]
    %v45 = vld [vmem:[%s1 + $0x50] sm:$0xff]
    %v46 = vld [vmem:[%s1 + $0x58] sm:$0xff]
    %v47 = vld [vmem:[%s1 + $0x60] sm:$0xff]
    %v48 = vld [vmem:[%s1 + $0x68] sm:$0xff]
    %v49 = vld [vmem:[%s1 + $0x70] sm:$0xff]
    %v50 = vld [vmem:[%s1 + $0x78] sm:$0xff]
    %v51 = vld [vmem:[%s0] sm:$0xff]
    %v52 = vld [vmem:[%s0 + $0x8] sm:$0xff]
    %v53 = vld [vmem:[%s0 + $0x10] sm:$0xff]
    %v54 = vld [vmem:[%s0 + $0x18] sm:$0xff]
    %v55 = vld [vmem:[%s0 + $0x20] sm:$0xff]
    %v56 = vld [vmem:[%s0 + $0x28] sm:$0xff]
    %v57 = vld [vmem:[%s0 + $0x30] sm:$0xff]
    %v58 = vld [vmem:[%s0 + $0x38] sm:$0xff]
    %v59 = vld [vmem:[%s0 + $0x40] sm:$0xff]
    %v60 = vld [vmem:[%s0 + $0x48] sm:$0xff]
    %v61 = vld [vmem:[%s0 + $0x50] sm:$0xff]
    %v62 = vld [vmem:[%s0 + $0x58] sm:$0xff]
    %v63 = vld [vmem:[%s0 + $0x60] sm:$0xff]
    %v64 = vld [vmem:[%s0 + $0x68] sm:$0xff]
    %v65 = vld [vmem:[%s0 + $0x70] sm:$0xff]
    %v66 = vld [vmem:[%s0 + $0x78] sm:$0xff]
    %67 = vadd.xlane.f32.xlu0 %v51
    %v68 = vpop.xlane.xlu0 %67
    %69 = vadd.xlane.f32.xlu0 %v52
    %v70 = vpop.xlane.xlu0 %69
    %71 = vadd.xlane.f32.xlu0 %v53
    %v72 = vpop.xlane.xlu0 %71
    %73 = vadd.xlane.f32.xlu0 %v54
    %v74 = vpop.xlane.xlu0 %73
    %75 = vadd.xlane.f32.xlu0 %v55
    %v76 = vpop.xlane.xlu0 %75
    %77 = vadd.xlane.f32.xlu0 %v56
    %v78 = vpop.xlane.xlu0 %77
    %79 = vadd.xlane.f32.xlu0 %v57
    %v80 = vpop.xlane.xlu0 %79
    %81 = vadd.xlane.f32.xlu0 %v58
    %v82 = vpop.xlane.xlu0 %81
    %83 = vadd.xlane.f32.xlu0 %v59
    %v84 = vpop.xlane.xlu0 %83
    %85 = vadd.xlane.f32.xlu0 %v60
    %v86 = vpop.xlane.xlu0 %85
    %87 = vadd.xlane.f32.xlu0 %v61
    %v88 = vpop.xlane.xlu0 %87
    %89 = vadd.xlane.f32.xlu0 %v62
    %v90 = vpop.xlane.xlu0 %89
    %91 = vadd.xlane.f32.xlu0 %v63
    %v92 = vpop.xlane.xlu0 %91
    %93 = vadd.xlane.f32.xlu0 %v64
    %v94 = vpop.xlane.xlu0 %93
    %95 = vadd.xlane.f32.xlu0 %v65
    %v96 = vpop.xlane.xlu0 %95
    %97 = vadd.xlane.f32.xlu0 %v66
    %v98 = vpop.xlane.xlu0 %97
    %v99 = vadd.f32 %v51, %v52
    %v100 = vadd.f32 %v99, %v53
    %v101 = vadd.f32 %v100, %v54
    %v102 = vadd.f32 %v101, %v55
    %v103 = vadd.f32 %v102, %v56
    %v104 = vadd.f32 %v103, %v57
    %v105 = vadd.f32 %v104, %v58
    %v106 = vadd.f32 %v105, %v59
    %v107 = vadd.f32 %v106, %v60
    %v108 = vadd.f32 %v107, %v61
    %v109 = vadd.f32 %v108, %v62
    %v110 = vadd.f32 %v109, %v63
    %v111 = vadd.f32 %v110, %v64
    %v112 = vadd.f32 %v111, %v65
    %v113 = vadd.f32 %v112, %v66
    %v114 = vrot.slane %v113, 4
    %v115 = vadd.f32 %v113, %v114
    %v116 = vrot.slane %v115, 2
    %v117 = vadd.f32 %v115, %v116
    %v118 = vrot.slane %v117, 1
    %v119 = vadd.f32 %v117, %v118
    %vm120 = vcmp.gt.f32.partialorder %v68, 0.0
    %vm121 = vcmp.gt.f32.partialorder %v70, 0.0
    %vm122 = vcmp.gt.f32.partialorder %v72, 0.0
    %vm123 = vcmp.gt.f32.partialorder %v74, 0.0
    %vm124 = vcmp.gt.f32.partialorder %v76, 0.0
    %vm125 = vcmp.gt.f32.partialorder %v78, 0.0
    %vm126 = vcmp.gt.f32.partialorder %v80, 0.0
    %vm127 = vcmp.gt.f32.partialorder %v82, 0.0
    %vm128 = vcmp.gt.f32.partialorder %v84, 0.0
    %vm129 = vcmp.gt.f32.partialorder %v86, 0.0
    %vm130 = vcmp.gt.f32.partialorder %v88, 0.0
    %vm131 = vcmp.gt.f32.partialorder %v90, 0.0
    %vm132 = vcmp.gt.f32.partialorder %v92, 0.0
    %vm133 = vcmp.gt.f32.partialorder %v94, 0.0
    %vm134 = vcmp.gt.f32.partialorder %v96, 0.0
    %vm135 = vcmp.gt.f32.partialorder %v98, 0.0
    %v136 = vmax.f32 %v68, 1e-12
    %v137 = vmax.f32 %v70, 1e-12
    %v138 = vmax.f32 %v72, 1e-12
    %v139 = vmax.f32 %v74, 1e-12
    %v140 = vmax.f32 %v76, 1e-12
    %v141 = vmax.f32 %v78, 1e-12
    %v142 = vmax.f32 %v80, 1e-12
    %v143 = vmax.f32 %v82, 1e-12
    %v144 = vmax.f32 %v84, 1e-12
    %v145 = vmax.f32 %v86, 1e-12
    %v146 = vmax.f32 %v88, 1e-12
    %v147 = vmax.f32 %v90, 1e-12
    %v148 = vmax.f32 %v92, 1e-12
    %v149 = vmax.f32 %v94, 1e-12
    %v150 = vmax.f32 %v96, 1e-12
    %v151 = vmax.f32 %v98, 1e-12
    %v152 = vrsqrt.pop %v136
    %v153 = vrsqrt.pop %v137
    %v154 = vrsqrt.pop %v138
    %v155 = vrsqrt.pop %v139
    %v156 = vrsqrt.pop %v140
    %v157 = vrsqrt.pop %v141
    %v158 = vrsqrt.pop %v142
    %v159 = vrsqrt.pop %v143
    %v160 = vrsqrt.pop %v144
    %v161 = vrsqrt.pop %v145
    %v162 = vrsqrt.pop %v146
    %v163 = vrsqrt.pop %v147
    %v164 = vrsqrt.pop %v148
    %v165 = vrsqrt.pop %v149
    %v166 = vrsqrt.pop %v150
    %v167 = vrsqrt.pop %v151
    %v168 = vsel %vm120, %v152, 0.0
    %v169 = vsel %vm121, %v153, 0.0
    %v170 = vsel %vm122, %v154, 0.0
    %v171 = vsel %vm123, %v155, 0.0
    %v172 = vsel %vm124, %v156, 0.0
    %v173 = vsel %vm125, %v157, 0.0
    %v174 = vsel %vm126, %v158, 0.0
    %v175 = vsel %vm127, %v159, 0.0
    %v176 = vsel %vm128, %v160, 0.0
    %v177 = vsel %vm129, %v161, 0.0
    %v178 = vsel %vm130, %v162, 0.0
    %v179 = vsel %vm131, %v163, 0.0
    %v180 = vsel %vm132, %v164, 0.0
    %v181 = vsel %vm133, %v165, 0.0
    %v182 = vsel %vm134, %v166, 0.0
    %v183 = vsel %vm135, %v167, 0.0
    %vm184 = vcmp.gt.f32.partialorder %v119, 0.0
    %v185 = vmax.f32 %v119, 1e-12
    %v186 = vrsqrt.pop %v185
    %v187 = vsel %vm184, %v186, 0.0
    %v188 = vmul.f32 %v51, %v168
    %v189 = vmul.f32 %v52, %v169
    %v190 = vmul.f32 %v53, %v170
    %v191 = vmul.f32 %v54, %v171
    %v192 = vmul.f32 %v55, %v172
    %v193 = vmul.f32 %v56, %v173
    %v194 = vmul.f32 %v57, %v174
    %v195 = vmul.f32 %v58, %v175
    %v196 = vmul.f32 %v59, %v176
    %v197 = vmul.f32 %v60, %v177
    %v198 = vmul.f32 %v61, %v178
    %v199 = vmul.f32 %v62, %v179
    %v200 = vmul.f32 %v63, %v180
    %v201 = vmul.f32 %v64, %v181
    %v202 = vmul.f32 %v65, %v182
    %v203 = vmul.f32 %v66, %v183
    %v204 = vmul.f32 %v188, %v187
    %v205 = vmul.f32 %v189, %v187
    %v206 = vmul.f32 %v190, %v187
    %v207 = vmul.f32 %v191, %v187
    %v208 = vmul.f32 %v192, %v187
    %v209 = vmul.f32 %v193, %v187
    %v210 = vmul.f32 %v194, %v187
    %v211 = vmul.f32 %v195, %v187
    %v212 = vmul.f32 %v196, %v187
    %v213 = vmul.f32 %v197, %v187
    %v214 = vmul.f32 %v198, %v187
    %v215 = vmul.f32 %v199, %v187
    %v216 = vmul.f32 %v200, %v187
    %v217 = vmul.f32 %v201, %v187
    %v218 = vmul.f32 %v202, %v187
    %v219 = vmul.f32 %v203, %v187
    %v220 = vpack.c.bf16 %v205, %v204
    %v221 = vpack.c.bf16 %v207, %v206
    %v222 = vpack.c.bf16 %v209, %v208
    %v223 = vpack.c.bf16 %v211, %v210
    %v224 = vpack.c.bf16 %v213, %v212
    %v225 = vpack.c.bf16 %v215, %v214
    %v226 = vpack.c.bf16 %v217, %v216
    %v227 = vpack.c.bf16 %v219, %v218
    %v228 = vld [vmem:[%s2] sm:$0x1]
    %v230 = vlaneseq
    %v231 = vshrl.u32 %v230, 7
    %v232 = vsub.s32 0, %v231
    %v233 = vrot.slane %v228, %v232
    %v235 = vmul.f32 %v35, %v233
    %v236 = vmul.f32 %v36, %v233
    %v237 = vmul.f32 %v37, %v233
    %v238 = vmul.f32 %v38, %v233
    %v239 = vmul.f32 %v39, %v233
    %v240 = vmul.f32 %v40, %v233
    %v241 = vmul.f32 %v41, %v233
    %v242 = vmul.f32 %v42, %v233
    %v243 = vmul.f32 %v43, %v233
    %v244 = vmul.f32 %v44, %v233
    %v245 = vmul.f32 %v45, %v233
    %v246 = vmul.f32 %v46, %v233
    %v247 = vmul.f32 %v47, %v233
    %v248 = vmul.f32 %v48, %v233
    %v249 = vmul.f32 %v49, %v233
    %v250 = vmul.f32 %v50, %v233
    %v251 = vpack.c.bf16 %v236, %v235
    %v252 = vpack.c.bf16 %v238, %v237
    %v253 = vpack.c.bf16 %v240, %v239
    %v254 = vpack.c.bf16 %v242, %v241
    %v255 = vpack.c.bf16 %v244, %v243
    %v256 = vpack.c.bf16 %v246, %v245
    %v257 = vpack.c.bf16 %v248, %v247
    %v258 = vpack.c.bf16 %v250, %v249
    %259 = vmatprep.subr.bf16.mxu0 0
    %260 = vmatpush1.bf16.msra.mxu0 %v251
    %261 = vmatprep.subr.bf16.mxu0 0
    %262 = vmatpush1.bf16.msra.mxu0 %v252
    %263 = vmatprep.subr.bf16.mxu0 0
    %264 = vmatpush1.bf16.msra.mxu0 %v253
    %265 = vmatprep.subr.bf16.mxu0 0
    %266 = vmatpush1.bf16.msra.mxu0 %v254
    %267 = vmatprep.subr.bf16.mxu0 0
    %268 = vmatpush1.bf16.msra.mxu0 %v255
    %269 = vmatprep.subr.bf16.mxu0 0
    %270 = vmatpush1.bf16.msra.mxu0 %v256
    %271 = vmatprep.subr.bf16.mxu0 0
    %272 = vmatpush1.bf16.msra.mxu0 %v257
    %273 = vmatprep.subr.bf16.mxu0 0
    %274 = vmatpush1.bf16.msra.mxu0 %v258
    %275 = vmatprep.subr.bf16.mxu0 0
    %276 = vmatpush1.bf16.msra.mxu0 0
    %277 = vmatprep.subr.bf16.mxu0 0
    %278 = vmatpush1.bf16.msra.mxu0 0
    %279 = vmatprep.subr.bf16.mxu0 0
    %280 = vmatpush1.bf16.msra.mxu0 0
    %281 = vmatprep.subr.bf16.mxu0 0
    %282 = vmatpush1.bf16.msra.mxu0 0
    %283 = vmatprep.subr.bf16.mxu0 0
    %284 = vmatpush1.bf16.msra.mxu0 0
    %285 = vmatprep.subr.bf16.mxu0 0
    %286 = vmatpush1.bf16.msra.mxu0 0
    %287 = vmatprep.subr.bf16.mxu0 0
    %288 = vmatpush1.bf16.msra.mxu0 0
    %289 = vmatprep.subr.bf16.mxu0 0
    %290 = vmatpush1.bf16.msra.mxu0 0
    %291 = vmatprep.mubr.bf16.mxu0 0
    %292 = vmatmul.mubr.bf16.gmra.mrb[0].mxu0 %v220
    %v293 = vpop.f32.mrb[0].mxu0
    %v294 = vadd.f32 0.0, %v293
    %v295 = vpop.f32.mrb[0].mxu0
    %v296 = vpop.f32.mrb[0].mxu0
    %v297 = vadd.f32 0.0, %v296
    %v298 = vpop.f32.mrb[0].mxu0
    %299 = vmatprep.mubr.bf16.mxu0 0
    %300 = vmatmul.mubr.bf16.gmra.mrb[0].mxu0 %v221
    %v301 = vpop.f32.mrb[0].mxu0
    %v302 = vadd.f32 0.0, %v301
    %v303 = vpop.f32.mrb[0].mxu0
    %v304 = vpop.f32.mrb[0].mxu0
    %v305 = vadd.f32 0.0, %v304
    %v306 = vpop.f32.mrb[0].mxu0
    %307 = vmatprep.mubr.bf16.mxu0 0
    %308 = vmatmul.mubr.bf16.gmra.mrb[0].mxu0 %v222
    %v309 = vpop.f32.mrb[0].mxu0
    %v310 = vadd.f32 0.0, %v309
    %v311 = vpop.f32.mrb[0].mxu0
    %v312 = vpop.f32.mrb[0].mxu0
    %v313 = vadd.f32 0.0, %v312
    %v314 = vpop.f32.mrb[0].mxu0
    %315 = vmatprep.mubr.bf16.mxu0 0
    %316 = vmatmul.mubr.bf16.gmra.mrb[0].mxu0 %v223
    %v317 = vpop.f32.mrb[0].mxu0
    %v318 = vadd.f32 0.0, %v317
    %v319 = vpop.f32.mrb[0].mxu0
    %v320 = vpop.f32.mrb[0].mxu0
    %v321 = vadd.f32 0.0, %v320
    %v322 = vpop.f32.mrb[0].mxu0
    %323 = vmatprep.mubr.bf16.mxu0 0
    %324 = vmatmul.mubr.bf16.gmra.mrb[0].mxu0 %v224
    %v325 = vpop.f32.mrb[0].mxu0
    %v326 = vadd.f32 0.0, %v325
    %v327 = vpop.f32.mrb[0].mxu0
    %v328 = vpop.f32.mrb[0].mxu0
    %v329 = vadd.f32 0.0, %v328
    %v330 = vpop.f32.mrb[0].mxu0
    %331 = vmatprep.mubr.bf16.mxu0 0
    %332 = vmatmul.mubr.bf16.gmra.mrb[0].mxu0 %v225
    %v333 = vpop.f32.mrb[0].mxu0
    %v334 = vadd.f32 0.0, %v333
    %v335 = vpop.f32.mrb[0].mxu0
    %v336 = vpop.f32.mrb[0].mxu0
    %v337 = vadd.f32 0.0, %v336
    %v338 = vpop.f32.mrb[0].mxu0
    %339 = vmatprep.mubr.bf16.mxu0 0
    %340 = vmatmul.mubr.bf16.gmra.mrb[0].mxu0 %v226
    %v341 = vpop.f32.mrb[0].mxu0
    %v342 = vadd.f32 0.0, %v341
    %v343 = vpop.f32.mrb[0].mxu0
    %v344 = vpop.f32.mrb[0].mxu0
    %v345 = vadd.f32 0.0, %v344
    %v346 = vpop.f32.mrb[0].mxu0
    %347 = vmatprep.mubr.bf16.mxu0 0
    %348 = vmatmul.mubr.bf16.gmra.mrb[0].mxu0 %v227
    %v349 = vpop.f32.mrb[0].mxu0
    %v350 = vadd.f32 0.0, %v349
    %v351 = vpop.f32.mrb[0].mxu0
    %v352 = vpop.f32.mrb[0].mxu0
    %v353 = vadd.f32 0.0, %v352
    %v354 = vpop.f32.mrb[0].mxu0
    %355 = vdwg.mxu0
    %v356 = vtanh.pop %v294
    %v357 = vtanh.pop %v297
    %v358 = vtanh.pop %v302
    %v359 = vtanh.pop %v305
    %v360 = vtanh.pop %v310
    %v361 = vtanh.pop %v313
    %v362 = vtanh.pop %v318
    %v363 = vtanh.pop %v321
    %v364 = vtanh.pop %v326
    %v365 = vtanh.pop %v329
    %v366 = vtanh.pop %v334
    %v367 = vtanh.pop %v337
    %v368 = vtanh.pop %v342
    %v369 = vtanh.pop %v345
    %v370 = vtanh.pop %v350
    %v371 = vtanh.pop %v353
    %v372 = vld [vmem:[%s3] sm:$0x1]
    %v374 = vlaneseq
    %v375 = vshrl.u32 %v374, 7
    %v376 = vsub.s32 0, %v375
    %v377 = vrot.slane %v372, %v376
    %v379 = vmul.f32 %v356, %v377
    %v380 = vmul.f32 %v357, %v377
    %v381 = vmul.f32 %v358, %v377
    %v382 = vmul.f32 %v359, %v377
    %v383 = vmul.f32 %v360, %v377
    %v384 = vmul.f32 %v361, %v377
    %v385 = vmul.f32 %v362, %v377
    %v386 = vmul.f32 %v363, %v377
    %v387 = vmul.f32 %v364, %v377
    %v388 = vmul.f32 %v365, %v377
    %v389 = vmul.f32 %v366, %v377
    %v390 = vmul.f32 %v367, %v377
    %v391 = vmul.f32 %v368, %v377
    %v392 = vmul.f32 %v369, %v377
    %v393 = vmul.f32 %v370, %v377
    %v394 = vmul.f32 %v371, %v377
    %v395 = vpack.c.bf16 %v380, %v379
    %v396 = vpack.c.bf16 %v382, %v381
    %v397 = vpack.c.bf16 %v384, %v383
    %v398 = vpack.c.bf16 %v386, %v385
    %v399 = vpack.c.bf16 %v388, %v387
    %v400 = vpack.c.bf16 %v390, %v389
    %v401 = vpack.c.bf16 %v392, %v391
    %v402 = vpack.c.bf16 %v394, %v393
    %403 = vmatprep.subr.bf16.mxu0 0
    %404 = vmatpush1.bf16.msra.mxu0 %v395
    %405 = vmatprep.subr.bf16.mxu0 0
    %406 = vmatpush1.bf16.msra.mxu0 %v396
    %407 = vmatprep.subr.bf16.mxu0 0
    %408 = vmatpush1.bf16.msra.mxu0 %v397
    %409 = vmatprep.subr.bf16.mxu0 0
    %410 = vmatpush1.bf16.msra.mxu0 %v398
    %411 = vmatprep.subr.bf16.mxu0 0
    %412 = vmatpush1.bf16.msra.mxu0 %v399
    %413 = vmatprep.subr.bf16.mxu0 0
    %414 = vmatpush1.bf16.msra.mxu0 %v400
    %415 = vmatprep.subr.bf16.mxu0 0
    %416 = vmatpush1.bf16.msra.mxu0 %v401
    %417 = vmatprep.subr.bf16.mxu0 0
    %418 = vmatpush1.bf16.msra.mxu0 %v402
    %419 = vmatprep.subr.bf16.mxu0 0
    %420 = vmatpush1.bf16.msra.mxu0 0
    %421 = vmatprep.subr.bf16.mxu0 0
    %422 = vmatpush1.bf16.msra.mxu0 0
    %423 = vmatprep.subr.bf16.mxu0 0
    %424 = vmatpush1.bf16.msra.mxu0 0
    %425 = vmatprep.subr.bf16.mxu0 0
    %426 = vmatpush1.bf16.msra.mxu0 0
    %427 = vmatprep.subr.bf16.mxu0 0
    %428 = vmatpush1.bf16.msra.mxu0 0
    %429 = vmatprep.subr.bf16.mxu0 0
    %430 = vmatpush1.bf16.msra.mxu0 0
    %431 = vmatprep.subr.bf16.mxu0 0
    %432 = vmatpush1.bf16.msra.mxu0 0
    %433 = vmatprep.subr.bf16.mxu0 0
    %434 = vmatpush1.bf16.msra.mxu0 0
    %435 = vmatprep.mubr.bf16.mxu0 0
    %436 = vmatmul.mubr.bf16.gmra.mrb[0].mxu0 %v220
    %v437 = vpop.f32.mrb[0].mxu0
    %v438 = vadd.f32 0.0, %v437
    %v439 = vpop.f32.mrb[0].mxu0
    %v440 = vpop.f32.mrb[0].mxu0
    %v441 = vadd.f32 0.0, %v440
    %v442 = vpop.f32.mrb[0].mxu0
    %443 = vmatprep.mubr.bf16.mxu0 0
    %444 = vmatmul.mubr.bf16.gmra.mrb[0].mxu0 %v221
    %v445 = vpop.f32.mrb[0].mxu0
    %v446 = vadd.f32 0.0, %v445
    %v447 = vpop.f32.mrb[0].mxu0
    %v448 = vpop.f32.mrb[0].mxu0
    %v449 = vadd.f32 0.0, %v448
    %v450 = vpop.f32.mrb[0].mxu0
    %451 = vmatprep.mubr.bf16.mxu0 0
    %452 = vmatmul.mubr.bf16.gmra.mrb[0].mxu0 %v222
    %v453 = vpop.f32.mrb[0].mxu0
    %v454 = vadd.f32 0.0, %v453
    %v455 = vpop.f32.mrb[0].mxu0
    %v456 = vpop.f32.mrb[0].mxu0
    %v457 = vadd.f32 0.0, %v456
    %v458 = vpop.f32.mrb[0].mxu0
    %459 = vmatprep.mubr.bf16.mxu0 0
    %460 = vmatmul.mubr.bf16.gmra.mrb[0].mxu0 %v223
    %v461 = vpop.f32.mrb[0].mxu0
    %v462 = vadd.f32 0.0, %v461
    %v463 = vpop.f32.mrb[0].mxu0
    %v464 = vpop.f32.mrb[0].mxu0
    %v465 = vadd.f32 0.0, %v464
    %v466 = vpop.f32.mrb[0].mxu0
    %467 = vmatprep.mubr.bf16.mxu0 0
    %468 = vmatmul.mubr.bf16.gmra.mrb[0].mxu0 %v224
    %v469 = vpop.f32.mrb[0].mxu0
    %v470 = vadd.f32 0.0, %v469
    %v471 = vpop.f32.mrb[0].mxu0
    %v472 = vpop.f32.mrb[0].mxu0
    %v473 = vadd.f32 0.0, %v472
    %v474 = vpop.f32.mrb[0].mxu0
    %475 = vmatprep.mubr.bf16.mxu0 0
    %476 = vmatmul.mubr.bf16.gmra.mrb[0].mxu0 %v225
    %v477 = vpop.f32.mrb[0].mxu0
    %v478 = vadd.f32 0.0, %v477
    %v479 = vpop.f32.mrb[0].mxu0
    %v480 = vpop.f32.mrb[0].mxu0
    %v481 = vadd.f32 0.0, %v480
    %v482 = vpop.f32.mrb[0].mxu0
    %483 = vmatprep.mubr.bf16.mxu0 0
    %484 = vmatmul.mubr.bf16.gmra.mrb[0].mxu0 %v226
    %v485 = vpop.f32.mrb[0].mxu0
    %v486 = vadd.f32 0.0, %v485
    %v487 = vpop.f32.mrb[0].mxu0
    %v488 = vpop.f32.mrb[0].mxu0
    %v489 = vadd.f32 0.0, %v488
    %v490 = vpop.f32.mrb[0].mxu0
    %491 = vmatprep.mubr.bf16.mxu0 0
    %492 = vmatmul.mubr.bf16.gmra.mrb[0].mxu0 %v227
    %v493 = vpop.f32.mrb[0].mxu0
    %v494 = vadd.f32 0.0, %v493
    %v495 = vpop.f32.mrb[0].mxu0
    %v496 = vpop.f32.mrb[0].mxu0
    %v497 = vadd.f32 0.0, %v496
    %v498 = vpop.f32.mrb[0].mxu0
    %499 = vdwg.mxu0
    %v500 = vmul.f32 %v438, %v438
    %v501 = vmul.f32 %v441, %v441
    %v502 = vmul.f32 %v446, %v446
    %v503 = vmul.f32 %v449, %v449
    %v504 = vmul.f32 %v454, %v454
    %v505 = vmul.f32 %v457, %v457
    %v506 = vmul.f32 %v462, %v462
    %v507 = vmul.f32 %v465, %v465
    %v508 = vmul.f32 %v470, %v470
    %v509 = vmul.f32 %v473, %v473
    %v510 = vmul.f32 %v478, %v478
    %v511 = vmul.f32 %v481, %v481
    %v512 = vmul.f32 %v486, %v486
    %v513 = vmul.f32 %v489, %v489
    %v514 = vmul.f32 %v494, %v494
    %v515 = vmul.f32 %v497, %v497
    %vm516 = vcmask 523264
    %v517 = vsel %vm516, %v500, 0.0
    %518 = vadd.xlane.f32.xlu0 %v517
    %v519 = vpop.xlane.xlu0 %518
    %v520 = vsel %vm516, %v501, 0.0
    %521 = vadd.xlane.f32.xlu0 %v520
    %v522 = vpop.xlane.xlu0 %521
    %v523 = vsel %vm516, %v502, 0.0
    %524 = vadd.xlane.f32.xlu0 %v523
    %v525 = vpop.xlane.xlu0 %524
    %v526 = vsel %vm516, %v503, 0.0
    %527 = vadd.xlane.f32.xlu0 %v526
    %v528 = vpop.xlane.xlu0 %527
    %v529 = vsel %vm516, %v504, 0.0
    %530 = vadd.xlane.f32.xlu0 %v529
    %v531 = vpop.xlane.xlu0 %530
    %v532 = vsel %vm516, %v505, 0.0
    %533 = vadd.xlane.f32.xlu0 %v532
    %v534 = vpop.xlane.xlu0 %533
    %v535 = vsel %vm516, %v506, 0.0
    %536 = vadd.xlane.f32.xlu0 %v535
    %v537 = vpop.xlane.xlu0 %536
    %v538 = vsel %vm516, %v507, 0.0
    %539 = vadd.xlane.f32.xlu0 %v538
    %v540 = vpop.xlane.xlu0 %539
    %v541 = vsel %vm516, %v508, 0.0
    %542 = vadd.xlane.f32.xlu0 %v541
    %v543 = vpop.xlane.xlu0 %542
    %v544 = vsel %vm516, %v509, 0.0
    %545 = vadd.xlane.f32.xlu0 %v544
    %v546 = vpop.xlane.xlu0 %545
    %v547 = vsel %vm516, %v510, 0.0
    %548 = vadd.xlane.f32.xlu0 %v547
    %v549 = vpop.xlane.xlu0 %548
    %v550 = vsel %vm516, %v511, 0.0
    %551 = vadd.xlane.f32.xlu0 %v550
    %v552 = vpop.xlane.xlu0 %551
    %v553 = vsel %vm516, %v512, 0.0
    %554 = vadd.xlane.f32.xlu0 %v553
    %v555 = vpop.xlane.xlu0 %554
    %v556 = vsel %vm516, %v513, 0.0
    %557 = vadd.xlane.f32.xlu0 %v556
    %v558 = vpop.xlane.xlu0 %557
    %v559 = vsel %vm516, %v514, 0.0
    %560 = vadd.xlane.f32.xlu0 %v559
    %v561 = vpop.xlane.xlu0 %560
    %v562 = vsel %vm516, %v515, 0.0
    %563 = vadd.xlane.f32.xlu0 %v562
    %v564 = vpop.xlane.xlu0 %563
    %v565 = vmax.f32 %v519, 1e-24
    %v566 = vmax.f32 %v522, 1e-24
    %v567 = vmax.f32 %v525, 1e-24
    %v568 = vmax.f32 %v528, 1e-24
    %v569 = vmax.f32 %v531, 1e-24
    %v570 = vmax.f32 %v534, 1e-24
    %v571 = vmax.f32 %v537, 1e-24
    %v572 = vmax.f32 %v540, 1e-24
    %v573 = vmax.f32 %v543, 1e-24
    %v574 = vmax.f32 %v546, 1e-24
    %v575 = vmax.f32 %v549, 1e-24
    %v576 = vmax.f32 %v552, 1e-24
    %v577 = vmax.f32 %v555, 1e-24
    %v578 = vmax.f32 %v558, 1e-24
    %v579 = vmax.f32 %v561, 1e-24
    %v580 = vmax.f32 %v564, 1e-24
    %v581 = vrsqrt.pop %v565
    %v582 = vrsqrt.pop %v566
    %v583 = vrsqrt.pop %v567
    %v584 = vrsqrt.pop %v568
    %v585 = vrsqrt.pop %v569
    %v586 = vrsqrt.pop %v570
    %v587 = vrsqrt.pop %v571
    %v588 = vrsqrt.pop %v572
    %v589 = vrsqrt.pop %v573
    %v590 = vrsqrt.pop %v574
    %v591 = vrsqrt.pop %v575
    %v592 = vrsqrt.pop %v576
    %v593 = vrsqrt.pop %v577
    %v594 = vrsqrt.pop %v578
    %v595 = vrsqrt.pop %v579
    %v596 = vrsqrt.pop %v580
    %v597 = vmul.f32 %v438, %v581
    %v598 = vmul.f32 %v441, %v582
    %v599 = vmul.f32 %v446, %v583
    %v600 = vmul.f32 %v449, %v584
    %v601 = vmul.f32 %v454, %v585
    %v602 = vmul.f32 %v457, %v586
    %v603 = vmul.f32 %v462, %v587
    %v604 = vmul.f32 %v465, %v588
    %v605 = vmul.f32 %v470, %v589
    %v606 = vmul.f32 %v473, %v590
    %v607 = vmul.f32 %v478, %v591
    %v608 = vmul.f32 %v481, %v592
    %v609 = vmul.f32 %v486, %v593
    %v610 = vmul.f32 %v489, %v594
    %v611 = vmul.f32 %v494, %v595
    %v612 = vmul.f32 %v497, %v596
    %v614 = vsel %vm516, %v597, 0
    %v617 = vsel %vm516, %v598, 0
    %v620 = vsel %vm516, %v599, 0
    %v623 = vsel %vm516, %v600, 0
    %v626 = vsel %vm516, %v601, 0
    %v629 = vsel %vm516, %v602, 0
    %v632 = vsel %vm516, %v603, 0
    %v635 = vsel %vm516, %v604, 0
    %v638 = vsel %vm516, %v605, 0
    %v641 = vsel %vm516, %v606, 0
    %v644 = vsel %vm516, %v607, 0
    %v647 = vsel %vm516, %v608, 0
    %v650 = vsel %vm516, %v609, 0
    %v653 = vsel %vm516, %v610, 0
    %v656 = vsel %vm516, %v611, 0
    %v659 = vsel %vm516, %v612, 0
    %661 = vmatprep.subr.mxu0 0.0
    %662 = vmatpush1.xpose.msra.mxu0 %v614
    %663 = vmatprep.subr.mxu0 0.0
    %664 = vmatpush1.xpose.msra.mxu0 %v617
    %665 = vmatprep.subr.mxu0 0.0
    %666 = vmatpush1.xpose.msra.mxu0 %v620
    %667 = vmatprep.subr.mxu0 0.0
    %668 = vmatpush1.xpose.msra.mxu0 %v623
    %669 = vmatprep.subr.mxu0 0.0
    %670 = vmatpush1.xpose.msra.mxu0 %v626
    %671 = vmatprep.subr.mxu0 0.0
    %672 = vmatpush1.xpose.msra.mxu0 %v629
    %673 = vmatprep.subr.mxu0 0.0
    %674 = vmatpush1.xpose.msra.mxu0 %v632
    %675 = vmatprep.subr.mxu0 0.0
    %676 = vmatpush1.xpose.msra.mxu0 %v635
    %677 = vmatprep.subr.mxu0 0.0
    %678 = vmatpush1.xpose.msra.mxu0 %v638
    %679 = vmatprep.subr.mxu0 0.0
    %680 = vmatpush1.xpose.msra.mxu0 %v641
    %681 = vmatprep.subr.mxu0 0.0
    %682 = vmatpush1.xpose.msra.mxu0 %v644
    %683 = vmatprep.subr.mxu0 0.0
    %684 = vmatpush1.xpose.msra.mxu0 %v647
    %685 = vmatprep.subr.mxu0 0.0
    %686 = vmatpush1.xpose.msra.mxu0 %v650
    %687 = vmatprep.subr.mxu0 0.0
    %688 = vmatpush1.xpose.msra.mxu0 %v653
    %689 = vmatprep.subr.mxu0 0.0
    %690 = vmatpush1.xpose.msra.mxu0 %v656
    %691 = vmatprep.subr.mxu0 0.0
    %692 = vmatpush1.xpose.msra.mxu0 %v659
    %693 = vmatprep.subr.mxu0 0.0
    %694 = vmatpush1.xpose.msra.mxu0 0.0
    %695 = vmatprep.subr.mxu0 0.0
    %696 = vmatpush1.xpose.msra.mxu0 0.0
    %697 = vmatprep.subr.mxu0 0.0
    %698 = vmatpush1.xpose.msra.mxu0 0.0
    %699 = vmatprep.subr.mxu0 0.0
    %700 = vmatpush1.xpose.msra.mxu0 0.0
    %701 = vmatprep.subr.mxu0 0.0
    %702 = vmatpush1.xpose.msra.mxu0 0.0
    %703 = vmatprep.subr.mxu0 0.0
    %704 = vmatpush1.xpose.msra.mxu0 0.0
    %705 = vmatprep.subr.mxu0 0.0
    %706 = vmatpush1.xpose.msra.mxu0 0.0
    %707 = vmatprep.subr.mxu0 0.0
    %708 = vmatpush1.xpose.msra.mxu0 0.0
    %709 = vmatprep.subr.mxu0 0.0
    %710 = vmatpush1.xpose.msra.mxu0 0.0
    %711 = vmatprep.subr.mxu0 0.0
    %712 = vmatpush1.xpose.msra.mxu0 0.0
    %713 = vmatprep.subr.mxu0 0.0
    %714 = vmatpush1.xpose.msra.mxu0 0.0
    %715 = vmatprep.subr.mxu0 0.0
    %716 = vmatpush1.xpose.msra.mxu0 0.0
    %717 = vmatprep.subr.mxu0 0.0
    %718 = vmatpush1.xpose.msra.mxu0 0.0
    %719 = vmatprep.subr.mxu0 0.0
    %720 = vmatpush1.xpose.msra.mxu0 0.0
    %721 = vmatprep.subr.mxu0 0.0
    %722 = vmatpush1.xpose.msra.mxu0 0.0
    %723 = vmatprep.subr.mxu0 0.0
    %724 = vmatpush1.xpose.msra.mxu0 0.0
    %725 = vmatprep.mubr.f32.mxu0 0.0
    %726 = vmatmul.mubr.f32.gmra.mrb[0].mxu0 %v614
    %v727 = vpop.f32.mrb[0].mxu0
    %v728 = vadd.f32 0.0, %v727
    %v729 = vpop.f32.mrb[0].mxu0
    %730 = vmatprep.mubr.f32.mxu0 0.0
    %731 = vmatmul.mubr.f32.gmra.mrb[0].mxu0 %v617
    %v732 = vpop.f32.mrb[0].mxu0
    %v733 = vadd.f32 0.0, %v732
    %v734 = vpop.f32.mrb[0].mxu0
    %735 = vmatprep.mubr.f32.mxu0 0.0
    %736 = vmatmul.mubr.f32.gmra.mrb[0].mxu0 %v620
    %v737 = vpop.f32.mrb[0].mxu0
    %v738 = vadd.f32 0.0, %v737
    %v739 = vpop.f32.mrb[0].mxu0
    %740 = vmatprep.mubr.f32.mxu0 0.0
    %741 = vmatmul.mubr.f32.gmra.mrb[0].mxu0 %v623
    %v742 = vpop.f32.mrb[0].mxu0
    %v743 = vadd.f32 0.0, %v742
    %v744 = vpop.f32.mrb[0].mxu0
    %745 = vmatprep.mubr.f32.mxu0 0.0
    %746 = vmatmul.mubr.f32.gmra.mrb[0].mxu0 %v626
    %v747 = vpop.f32.mrb[0].mxu0
    %v748 = vadd.f32 0.0, %v747
    %v749 = vpop.f32.mrb[0].mxu0
    %750 = vmatprep.mubr.f32.mxu0 0.0
    %751 = vmatmul.mubr.f32.gmra.mrb[0].mxu0 %v629
    %v752 = vpop.f32.mrb[0].mxu0
    %v753 = vadd.f32 0.0, %v752
    %v754 = vpop.f32.mrb[0].mxu0
    %755 = vmatprep.mubr.f32.mxu0 0.0
    %756 = vmatmul.mubr.f32.gmra.mrb[0].mxu0 %v632
    %v757 = vpop.f32.mrb[0].mxu0
    %v758 = vadd.f32 0.0, %v757
    %v759 = vpop.f32.mrb[0].mxu0
    %760 = vmatprep.mubr.f32.mxu0 0.0
    %761 = vmatmul.mubr.f32.gmra.mrb[0].mxu0 %v635
    %v762 = vpop.f32.mrb[0].mxu0
    %v763 = vadd.f32 0.0, %v762
    %v764 = vpop.f32.mrb[0].mxu0
    %765 = vmatprep.mubr.f32.mxu0 0.0
    %766 = vmatmul.mubr.f32.gmra.mrb[0].mxu0 %v638
    %v767 = vpop.f32.mrb[0].mxu0
    %v768 = vadd.f32 0.0, %v767
    %v769 = vpop.f32.mrb[0].mxu0
    %770 = vmatprep.mubr.f32.mxu0 0.0
    %771 = vmatmul.mubr.f32.gmra.mrb[0].mxu0 %v641
    %v772 = vpop.f32.mrb[0].mxu0
    %v773 = vadd.f32 0.0, %v772
    %v774 = vpop.f32.mrb[0].mxu0
    %775 = vmatprep.mubr.f32.mxu0 0.0
    %776 = vmatmul.mubr.f32.gmra.mrb[0].mxu0 %v644
    %v777 = vpop.f32.mrb[0].mxu0
    %v778 = vadd.f32 0.0, %v777
    %v779 = vpop.f32.mrb[0].mxu0
    %780 = vmatprep.mubr.f32.mxu0 0.0
    %781 = vmatmul.mubr.f32.gmra.mrb[0].mxu0 %v647
    %v782 = vpop.f32.mrb[0].mxu0
    %v783 = vadd.f32 0.0, %v782
    %v784 = vpop.f32.mrb[0].mxu0
    %785 = vmatprep.mubr.f32.mxu0 0.0
    %786 = vmatmul.mubr.f32.gmra.mrb[0].mxu0 %v650
    %v787 = vpop.f32.mrb[0].mxu0
    %v788 = vadd.f32 0.0, %v787
    %v789 = vpop.f32.mrb[0].mxu0
    %790 = vmatprep.mubr.f32.mxu0 0.0
    %791 = vmatmul.mubr.f32.gmra.mrb[0].mxu0 %v653
    %v792 = vpop.f32.mrb[0].mxu0
    %v793 = vadd.f32 0.0, %v792
    %v794 = vpop.f32.mrb[0].mxu0
    %795 = vmatprep.mubr.f32.mxu0 0.0
    %796 = vmatmul.mubr.f32.gmra.mrb[0].mxu0 %v656
    %v797 = vpop.f32.mrb[0].mxu0
    %v798 = vadd.f32 0.0, %v797
    %v799 = vpop.f32.mrb[0].mxu0
    %800 = vmatprep.mubr.f32.mxu0 0.0
    %801 = vmatmul.mubr.f32.gmra.mrb[0].mxu0 %v659
    %v802 = vpop.f32.mrb[0].mxu0
    %v803 = vadd.f32 0.0, %v802
    %v804 = vpop.f32.mrb[0].mxu0
    %805 = vdwg.mxu0
    %806 = vmax.xlane.f32.xlu0 %v728
    %v807 = vpop.xlane.xlu0 %806
    %808 = vmax.xlane.f32.xlu0 %v733
    %v809 = vpop.xlane.xlu0 %808
    %810 = vmax.xlane.f32.xlu0 %v738
    %v811 = vpop.xlane.xlu0 %810
    %812 = vmax.xlane.f32.xlu0 %v743
    %v813 = vpop.xlane.xlu0 %812
    %814 = vmax.xlane.f32.xlu0 %v748
    %v815 = vpop.xlane.xlu0 %814
    %816 = vmax.xlane.f32.xlu0 %v753
    %v817 = vpop.xlane.xlu0 %816
    %818 = vmax.xlane.f32.xlu0 %v758
    %v819 = vpop.xlane.xlu0 %818
    %820 = vmax.xlane.f32.xlu0 %v763
    %v821 = vpop.xlane.xlu0 %820
    %822 = vmax.xlane.f32.xlu0 %v768
    %v823 = vpop.xlane.xlu0 %822
    %824 = vmax.xlane.f32.xlu0 %v773
    %v825 = vpop.xlane.xlu0 %824
    %826 = vmax.xlane.f32.xlu0 %v778
    %v827 = vpop.xlane.xlu0 %826
    %828 = vmax.xlane.f32.xlu0 %v783
    %v829 = vpop.xlane.xlu0 %828
    %830 = vmax.xlane.f32.xlu0 %v788
    %v831 = vpop.xlane.xlu0 %830
    %832 = vmax.xlane.f32.xlu0 %v793
    %v833 = vpop.xlane.xlu0 %832
    %834 = vmax.xlane.f32.xlu0 %v798
    %v835 = vpop.xlane.xlu0 %834
    %836 = vmax.xlane.f32.xlu0 %v803
    %v837 = vpop.xlane.xlu0 %836
    %vm838 = vcmp.ge.f32.partialorder %v728, %v807
    %vm839 = vcmp.ge.f32.partialorder %v733, %v809
    %vm840 = vcmp.ge.f32.partialorder %v738, %v811
    %vm841 = vcmp.ge.f32.partialorder %v743, %v813
    %vm842 = vcmp.ge.f32.partialorder %v748, %v815
    %vm843 = vcmp.ge.f32.partialorder %v753, %v817
    %vm844 = vcmp.ge.f32.partialorder %v758, %v819
    %vm845 = vcmp.ge.f32.partialorder %v763, %v821
    %vm846 = vcmp.ge.f32.partialorder %v768, %v823
    %vm847 = vcmp.ge.f32.partialorder %v773, %v825
    %vm848 = vcmp.ge.f32.partialorder %v778, %v827
    %vm849 = vcmp.ge.f32.partialorder %v783, %v829
    %vm850 = vcmp.ge.f32.partialorder %v788, %v831
    %vm851 = vcmp.ge.f32.partialorder %v793, %v833
    %vm852 = vcmp.ge.f32.partialorder %v798, %v835
    %vm853 = vcmp.ge.f32.partialorder %v803, %v837
    %v854 = vsel %vm838, -inf, %v728
    %v855 = vsel %vm839, -inf, %v733
    %v856 = vsel %vm840, -inf, %v738
    %v857 = vsel %vm841, -inf, %v743
    %v858 = vsel %vm842, -inf, %v748
    %v859 = vsel %vm843, -inf, %v753
    %v860 = vsel %vm844, -inf, %v758
    %v861 = vsel %vm845, -inf, %v763
    %v862 = vsel %vm846, -inf, %v768
    %v863 = vsel %vm847, -inf, %v773
    %v864 = vsel %vm848, -inf, %v778
    %v865 = vsel %vm849, -inf, %v783
    %v866 = vsel %vm850, -inf, %v788
    %v867 = vsel %vm851, -inf, %v793
    %v868 = vsel %vm852, -inf, %v798
    %v869 = vsel %vm853, -inf, %v803
    %870 = vmax.xlane.f32.xlu0 %v854
    %v871 = vpop.xlane.xlu0 %870
    %872 = vmax.xlane.f32.xlu0 %v855
    %v873 = vpop.xlane.xlu0 %872
    %874 = vmax.xlane.f32.xlu0 %v856
    %v875 = vpop.xlane.xlu0 %874
    %876 = vmax.xlane.f32.xlu0 %v857
    %v877 = vpop.xlane.xlu0 %876
    %878 = vmax.xlane.f32.xlu0 %v858
    %v879 = vpop.xlane.xlu0 %878
    %880 = vmax.xlane.f32.xlu0 %v859
    %v881 = vpop.xlane.xlu0 %880
    %882 = vmax.xlane.f32.xlu0 %v860
    %v883 = vpop.xlane.xlu0 %882
    %884 = vmax.xlane.f32.xlu0 %v861
    %v885 = vpop.xlane.xlu0 %884
    %886 = vmax.xlane.f32.xlu0 %v862
    %v887 = vpop.xlane.xlu0 %886
    %888 = vmax.xlane.f32.xlu0 %v863
    %v889 = vpop.xlane.xlu0 %888
    %890 = vmax.xlane.f32.xlu0 %v864
    %v891 = vpop.xlane.xlu0 %890
    %892 = vmax.xlane.f32.xlu0 %v865
    %v893 = vpop.xlane.xlu0 %892
    %894 = vmax.xlane.f32.xlu0 %v866
    %v895 = vpop.xlane.xlu0 %894
    %896 = vmax.xlane.f32.xlu0 %v867
    %v897 = vpop.xlane.xlu0 %896
    %898 = vmax.xlane.f32.xlu0 %v868
    %v899 = vpop.xlane.xlu0 %898
    %900 = vmax.xlane.f32.xlu0 %v869
    %v901 = vpop.xlane.xlu0 %900
    %vm902 = vcmp.ge.f32.partialorder %v854, %v871
    %vm903 = vcmp.ge.f32.partialorder %v855, %v873
    %vm904 = vcmp.ge.f32.partialorder %v856, %v875
    %vm905 = vcmp.ge.f32.partialorder %v857, %v877
    %vm906 = vcmp.ge.f32.partialorder %v858, %v879
    %vm907 = vcmp.ge.f32.partialorder %v859, %v881
    %vm908 = vcmp.ge.f32.partialorder %v860, %v883
    %vm909 = vcmp.ge.f32.partialorder %v861, %v885
    %vm910 = vcmp.ge.f32.partialorder %v862, %v887
    %vm911 = vcmp.ge.f32.partialorder %v863, %v889
    %vm912 = vcmp.ge.f32.partialorder %v864, %v891
    %vm913 = vcmp.ge.f32.partialorder %v865, %v893
    %vm914 = vcmp.ge.f32.partialorder %v866, %v895
    %vm915 = vcmp.ge.f32.partialorder %v867, %v897
    %vm916 = vcmp.ge.f32.partialorder %v868, %v899
    %vm917 = vcmp.ge.f32.partialorder %v869, %v901
    %v918 = vsel %vm902, -inf, %v854
    %v919 = vsel %vm903, -inf, %v855
    %v920 = vsel %vm904, -inf, %v856
    %v921 = vsel %vm905, -inf, %v857
    %v922 = vsel %vm906, -inf, %v858
    %v923 = vsel %vm907, -inf, %v859
    %v924 = vsel %vm908, -inf, %v860
    %v925 = vsel %vm909, -inf, %v861
    %v926 = vsel %vm910, -inf, %v862
    %v927 = vsel %vm911, -inf, %v863
    %v928 = vsel %vm912, -inf, %v864
    %v929 = vsel %vm913, -inf, %v865
    %v930 = vsel %vm914, -inf, %v866
    %v931 = vsel %vm915, -inf, %v867
    %v932 = vsel %vm916, -inf, %v868
    %v933 = vsel %vm917, -inf, %v869
    %934 = vmax.xlane.f32.xlu0 %v918
    %v935 = vpop.xlane.xlu0 %934
    %936 = vmax.xlane.f32.xlu0 %v919
    %v937 = vpop.xlane.xlu0 %936
    %938 = vmax.xlane.f32.xlu0 %v920
    %v939 = vpop.xlane.xlu0 %938
    %940 = vmax.xlane.f32.xlu0 %v921
    %v941 = vpop.xlane.xlu0 %940
    %942 = vmax.xlane.f32.xlu0 %v922
    %v943 = vpop.xlane.xlu0 %942
    %944 = vmax.xlane.f32.xlu0 %v923
    %v945 = vpop.xlane.xlu0 %944
    %946 = vmax.xlane.f32.xlu0 %v924
    %v947 = vpop.xlane.xlu0 %946
    %948 = vmax.xlane.f32.xlu0 %v925
    %v949 = vpop.xlane.xlu0 %948
    %950 = vmax.xlane.f32.xlu0 %v926
    %v951 = vpop.xlane.xlu0 %950
    %952 = vmax.xlane.f32.xlu0 %v927
    %v953 = vpop.xlane.xlu0 %952
    %954 = vmax.xlane.f32.xlu0 %v928
    %v955 = vpop.xlane.xlu0 %954
    %956 = vmax.xlane.f32.xlu0 %v929
    %v957 = vpop.xlane.xlu0 %956
    %958 = vmax.xlane.f32.xlu0 %v930
    %v959 = vpop.xlane.xlu0 %958
    %960 = vmax.xlane.f32.xlu0 %v931
    %v961 = vpop.xlane.xlu0 %960
    %962 = vmax.xlane.f32.xlu0 %v932
    %v963 = vpop.xlane.xlu0 %962
    %964 = vmax.xlane.f32.xlu0 %v933
    %v965 = vpop.xlane.xlu0 %964
    %vm966 = vcmp.ge.f32.partialorder %v918, %v935
    %vm967 = vcmp.ge.f32.partialorder %v919, %v937
    %vm968 = vcmp.ge.f32.partialorder %v920, %v939
    %vm969 = vcmp.ge.f32.partialorder %v921, %v941
    %vm970 = vcmp.ge.f32.partialorder %v922, %v943
    %vm971 = vcmp.ge.f32.partialorder %v923, %v945
    %vm972 = vcmp.ge.f32.partialorder %v924, %v947
    %vm973 = vcmp.ge.f32.partialorder %v925, %v949
    %vm974 = vcmp.ge.f32.partialorder %v926, %v951
    %vm975 = vcmp.ge.f32.partialorder %v927, %v953
    %vm976 = vcmp.ge.f32.partialorder %v928, %v955
    %vm977 = vcmp.ge.f32.partialorder %v929, %v957
    %vm978 = vcmp.ge.f32.partialorder %v930, %v959
    %vm979 = vcmp.ge.f32.partialorder %v931, %v961
    %vm980 = vcmp.ge.f32.partialorder %v932, %v963
    %vm981 = vcmp.ge.f32.partialorder %v933, %v965
    %v982 = vsel %vm966, -inf, %v918
    %v983 = vsel %vm967, -inf, %v919
    %v984 = vsel %vm968, -inf, %v920
    %v985 = vsel %vm969, -inf, %v921
    %v986 = vsel %vm970, -inf, %v922
    %v987 = vsel %vm971, -inf, %v923
    %v988 = vsel %vm972, -inf, %v924
    %v989 = vsel %vm973, -inf, %v925
    %v990 = vsel %vm974, -inf, %v926
    %v991 = vsel %vm975, -inf, %v927
    %v992 = vsel %vm976, -inf, %v928
    %v993 = vsel %vm977, -inf, %v929
    %v994 = vsel %vm978, -inf, %v930
    %v995 = vsel %vm979, -inf, %v931
    %v996 = vsel %vm980, -inf, %v932
    %v997 = vsel %vm981, -inf, %v933
    %998 = vmax.xlane.f32.xlu0 %v982
    %v999 = vpop.xlane.xlu0 %998
    %1000 = vmax.xlane.f32.xlu0 %v983
    %v1001 = vpop.xlane.xlu0 %1000
    %1002 = vmax.xlane.f32.xlu0 %v984
    %v1003 = vpop.xlane.xlu0 %1002
    %1004 = vmax.xlane.f32.xlu0 %v985
    %v1005 = vpop.xlane.xlu0 %1004
    %1006 = vmax.xlane.f32.xlu0 %v986
    %v1007 = vpop.xlane.xlu0 %1006
    %1008 = vmax.xlane.f32.xlu0 %v987
    %v1009 = vpop.xlane.xlu0 %1008
    %1010 = vmax.xlane.f32.xlu0 %v988
    %v1011 = vpop.xlane.xlu0 %1010
    %1012 = vmax.xlane.f32.xlu0 %v989
    %v1013 = vpop.xlane.xlu0 %1012
    %1014 = vmax.xlane.f32.xlu0 %v990
    %v1015 = vpop.xlane.xlu0 %1014
    %1016 = vmax.xlane.f32.xlu0 %v991
    %v1017 = vpop.xlane.xlu0 %1016
    %1018 = vmax.xlane.f32.xlu0 %v992
    %v1019 = vpop.xlane.xlu0 %1018
    %1020 = vmax.xlane.f32.xlu0 %v993
    %v1021 = vpop.xlane.xlu0 %1020
    %1022 = vmax.xlane.f32.xlu0 %v994
    %v1023 = vpop.xlane.xlu0 %1022
    %1024 = vmax.xlane.f32.xlu0 %v995
    %v1025 = vpop.xlane.xlu0 %1024
    %1026 = vmax.xlane.f32.xlu0 %v996
    %v1027 = vpop.xlane.xlu0 %1026
    %1028 = vmax.xlane.f32.xlu0 %v997
    %v1029 = vpop.xlane.xlu0 %1028
    %vm1030 = vcmp.ge.f32.partialorder %v728, %v999
    %vm1031 = vcmp.ge.f32.partialorder %v733, %v1001
    %vm1032 = vcmp.ge.f32.partialorder %v738, %v1003
    %vm1033 = vcmp.ge.f32.partialorder %v743, %v1005
    %vm1034 = vcmp.ge.f32.partialorder %v748, %v1007
    %vm1035 = vcmp.ge.f32.partialorder %v753, %v1009
    %vm1036 = vcmp.ge.f32.partialorder %v758, %v1011
    %vm1037 = vcmp.ge.f32.partialorder %v763, %v1013
    %vm1038 = vcmp.ge.f32.partialorder %v768, %v1015
    %vm1039 = vcmp.ge.f32.partialorder %v773, %v1017
    %vm1040 = vcmp.ge.f32.partialorder %v778, %v1019
    %vm1041 = vcmp.ge.f32.partialorder %v783, %v1021
    %vm1042 = vcmp.ge.f32.partialorder %v788, %v1023
    %vm1043 = vcmp.ge.f32.partialorder %v793, %v1025
    %vm1044 = vcmp.ge.f32.partialorder %v798, %v1027
    %vm1045 = vcmp.ge.f32.partialorder %v803, %v1029
    %v1046 = vsel %vm1030, %v728, 0.0
    %v1047 = vsel %vm1031, %v733, 0.0
    %v1048 = vsel %vm1032, %v738, 0.0
    %v1049 = vsel %vm1033, %v743, 0.0
    %v1050 = vsel %vm1034, %v748, 0.0
    %v1051 = vsel %vm1035, %v753, 0.0
    %v1052 = vsel %vm1036, %v758, 0.0
    %v1053 = vsel %vm1037, %v763, 0.0
    %v1054 = vsel %vm1038, %v768, 0.0
    %v1055 = vsel %vm1039, %v773, 0.0
    %v1056 = vsel %vm1040, %v778, 0.0
    %v1057 = vsel %vm1041, %v783, 0.0
    %v1058 = vsel %vm1042, %v788, 0.0
    %v1059 = vsel %vm1043, %v793, 0.0
    %v1060 = vsel %vm1044, %v798, 0.0
    %v1061 = vsel %vm1045, %v803, 0.0
    %1062 = vxpose.xlu0.b32.start [1/16] %v1046, 128
    %1063 = vxpose.xlu0.b32.cont [2/16] %v1047, 128
    %1064 = vxpose.xlu0.b32.cont [3/16] %v1048, 128
    %1065 = vxpose.xlu0.b32.cont [4/16] %v1049, 128
    %1066 = vxpose.xlu0.b32.cont [5/16] %v1050, 128
    %1067 = vxpose.xlu0.b32.cont [6/16] %v1051, 128
    %1068 = vxpose.xlu0.b32.cont [7/16] %v1052, 128
    %1069 = vxpose.xlu0.b32.cont [8/16] %v1053, 128
    %1070 = vxpose.xlu0.b32.cont [9/16] %v1054, 128
    %1071 = vxpose.xlu0.b32.cont [10/16] %v1055, 128
    %1072 = vxpose.xlu0.b32.cont [11/16] %v1056, 128
    %1073 = vxpose.xlu0.b32.cont [12/16] %v1057, 128
    %1074 = vxpose.xlu0.b32.cont [13/16] %v1058, 128
    %1075 = vxpose.xlu0.b32.cont [14/16] %v1059, 128
    %1076 = vxpose.xlu0.b32.cont [15/16] %v1060, 128
    %1077 = vxpose.xlu0.b32.end [16/16] %v1061, 128
    %v1078 = vpop.trf.xlu0
    %v1079 = vpop.trf.xlu0
    %v1080 = vpop.trf.xlu0
    %v1081 = vpop.trf.xlu0
    %v1082 = vpop.trf.xlu0
    %v1083 = vpop.trf.xlu0
    %v1084 = vpop.trf.xlu0
    %v1085 = vpop.trf.xlu0
    %v1086 = vpop.trf.xlu0
    %v1087 = vpop.trf.xlu0
    %v1088 = vpop.trf.xlu0
    %v1089 = vpop.trf.xlu0
    %v1090 = vpop.trf.xlu0
    %v1091 = vpop.trf.xlu0
    %v1092 = vpop.trf.xlu0
    %v1093 = vpop.trf.xlu0
    %v1094 = vadd.f32 %v1046, %v1078
    %v1095 = vadd.f32 %v1047, %v1079
    %v1096 = vadd.f32 %v1048, %v1080
    %v1097 = vadd.f32 %v1049, %v1081
    %v1098 = vadd.f32 %v1050, %v1082
    %v1099 = vadd.f32 %v1051, %v1083
    %v1100 = vadd.f32 %v1052, %v1084
    %v1101 = vadd.f32 %v1053, %v1085
    %v1102 = vadd.f32 %v1054, %v1086
    %v1103 = vadd.f32 %v1055, %v1087
    %v1104 = vadd.f32 %v1056, %v1088
    %v1105 = vadd.f32 %v1057, %v1089
    %v1106 = vadd.f32 %v1058, %v1090
    %v1107 = vadd.f32 %v1059, %v1091
    %v1108 = vadd.f32 %v1060, %v1092
    %v1109 = vadd.f32 %v1061, %v1093
    %1110 = vst [vmem:[#allocation2] sm:$0xff] %v1094
    %1111 = vst [vmem:[#allocation2 + $0x8] sm:$0xff] %v1095
    %1112 = vst [vmem:[#allocation2 + $0x10] sm:$0xff] %v1096
    %1113 = vst [vmem:[#allocation2 + $0x18] sm:$0xff] %v1097
    %1114 = vst [vmem:[#allocation2 + $0x20] sm:$0xff] %v1098
    %1115 = vst [vmem:[#allocation2 + $0x28] sm:$0xff] %v1099
    %1116 = vst [vmem:[#allocation2 + $0x30] sm:$0xff] %v1100
    %1117 = vst [vmem:[#allocation2 + $0x38] sm:$0xff] %v1101
    %1118 = vst [vmem:[#allocation2 + $0x40] sm:$0xff] %v1102
    %1119 = vst [vmem:[#allocation2 + $0x48] sm:$0xff] %v1103
    %1120 = vst [vmem:[#allocation2 + $0x50] sm:$0xff] %v1104
    %1121 = vst [vmem:[#allocation2 + $0x58] sm:$0xff] %v1105
    %1122 = vst [vmem:[#allocation2 + $0x60] sm:$0xff] %v1106
    %1123 = vst [vmem:[#allocation2 + $0x68] sm:$0xff] %v1107
    %1124 = vst [vmem:[#allocation2 + $0x70] sm:$0xff] %v1108
    %1125 = vst [vmem:[#allocation2 + $0x78] sm:$0xff] %v1109
    %v1126 = vld [vmem:[#allocation2] sm:$0xff]
    %v1127 = vld [vmem:[#allocation2 + $0x8] sm:$0xff]
    %v1128 = vld [vmem:[#allocation2 + $0x10] sm:$0xff]
    %v1129 = vld [vmem:[#allocation2 + $0x18] sm:$0xff]
    %v1130 = vld [vmem:[#allocation2 + $0x20] sm:$0xff]
    %v1131 = vld [vmem:[#allocation2 + $0x28] sm:$0xff]
    %v1132 = vld [vmem:[#allocation2 + $0x30] sm:$0xff]
    %v1133 = vld [vmem:[#allocation2 + $0x38] sm:$0xff]
    %v1134 = vld [vmem:[#allocation2 + $0x40] sm:$0xff]
    %v1135 = vld [vmem:[#allocation2 + $0x48] sm:$0xff]
    %v1136 = vld [vmem:[#allocation2 + $0x50] sm:$0xff]
    %v1137 = vld [vmem:[#allocation2 + $0x58] sm:$0xff]
    %v1138 = vld [vmem:[#allocation2 + $0x60] sm:$0xff]
    %v1139 = vld [vmem:[#allocation2 + $0x68] sm:$0xff]
    %v1140 = vld [vmem:[#allocation2 + $0x70] sm:$0xff]
    %v1141 = vld [vmem:[#allocation2 + $0x78] sm:$0xff]
    %v1142 = vld [vmem:[%s0] sm:$0xff]
    %v1143 = vld [vmem:[%s0 + $0x8] sm:$0xff]
    %v1144 = vld [vmem:[%s0 + $0x10] sm:$0xff]
    %v1145 = vld [vmem:[%s0 + $0x18] sm:$0xff]
    %v1146 = vld [vmem:[%s0 + $0x20] sm:$0xff]
    %v1147 = vld [vmem:[%s0 + $0x28] sm:$0xff]
    %v1148 = vld [vmem:[%s0 + $0x30] sm:$0xff]
    %v1149 = vld [vmem:[%s0 + $0x38] sm:$0xff]
    %v1150 = vld [vmem:[%s0 + $0x40] sm:$0xff]
    %v1151 = vld [vmem:[%s0 + $0x48] sm:$0xff]
    %v1152 = vld [vmem:[%s0 + $0x50] sm:$0xff]
    %v1153 = vld [vmem:[%s0 + $0x58] sm:$0xff]
    %v1154 = vld [vmem:[%s0 + $0x60] sm:$0xff]
    %v1155 = vld [vmem:[%s0 + $0x68] sm:$0xff]
    %v1156 = vld [vmem:[%s0 + $0x70] sm:$0xff]
    %v1157 = vld [vmem:[%s0 + $0x78] sm:$0xff]
    %v1158 = vadd.f32 %v1126, %v1142
    %v1159 = vadd.f32 %v1127, %v1143
    %v1160 = vadd.f32 %v1128, %v1144
    %v1161 = vadd.f32 %v1129, %v1145
    %v1162 = vadd.f32 %v1130, %v1146
    %v1163 = vadd.f32 %v1131, %v1147
    %v1164 = vadd.f32 %v1132, %v1148
    %v1165 = vadd.f32 %v1133, %v1149
    %v1166 = vadd.f32 %v1134, %v1150
    %v1167 = vadd.f32 %v1135, %v1151
    %v1168 = vadd.f32 %v1136, %v1152
    %v1169 = vadd.f32 %v1137, %v1153
    %v1170 = vadd.f32 %v1138, %v1154
    %v1171 = vadd.f32 %v1139, %v1155
    %v1172 = vadd.f32 %v1140, %v1156
    %v1173 = vadd.f32 %v1141, %v1157
    %1174 = vst [vmem:[#allocation4] sm:$0xff] %v1158
    %1175 = vst [vmem:[#allocation4 + $0x8] sm:$0xff] %v1159
    %1176 = vst [vmem:[#allocation4 + $0x10] sm:$0xff] %v1160
    %1177 = vst [vmem:[#allocation4 + $0x18] sm:$0xff] %v1161
    %1178 = vst [vmem:[#allocation4 + $0x20] sm:$0xff] %v1162
    %1179 = vst [vmem:[#allocation4 + $0x28] sm:$0xff] %v1163
    %1180 = vst [vmem:[#allocation4 + $0x30] sm:$0xff] %v1164
    %1181 = vst [vmem:[#allocation4 + $0x38] sm:$0xff] %v1165
    %1182 = vst [vmem:[#allocation4 + $0x40] sm:$0xff] %v1166
    %1183 = vst [vmem:[#allocation4 + $0x48] sm:$0xff] %v1167
    %1184 = vst [vmem:[#allocation4 + $0x50] sm:$0xff] %v1168
    %1185 = vst [vmem:[#allocation4 + $0x58] sm:$0xff] %v1169
    %1186 = vst [vmem:[#allocation4 + $0x60] sm:$0xff] %v1170
    %1187 = vst [vmem:[#allocation4 + $0x68] sm:$0xff] %v1171
    %1188 = vst [vmem:[#allocation4 + $0x70] sm:$0xff] %v1172
    %1189 = vst [vmem:[#allocation4 + $0x78] sm:$0xff] %v1173
    %v1190 = vld [vmem:[#allocation4] sm:$0xff]
    %v1191 = vld [vmem:[#allocation4 + $0x8] sm:$0xff]
    %v1192 = vld [vmem:[#allocation4 + $0x10] sm:$0xff]
    %v1193 = vld [vmem:[#allocation4 + $0x18] sm:$0xff]
    %v1194 = vld [vmem:[#allocation4 + $0x20] sm:$0xff]
    %v1195 = vld [vmem:[#allocation4 + $0x28] sm:$0xff]
    %v1196 = vld [vmem:[#allocation4 + $0x30] sm:$0xff]
    %v1197 = vld [vmem:[#allocation4 + $0x38] sm:$0xff]
    %v1198 = vld [vmem:[#allocation4 + $0x40] sm:$0xff]
    %v1199 = vld [vmem:[#allocation4 + $0x48] sm:$0xff]
    %v1200 = vld [vmem:[#allocation4 + $0x50] sm:$0xff]
    %v1201 = vld [vmem:[#allocation4 + $0x58] sm:$0xff]
    %v1202 = vld [vmem:[#allocation4 + $0x60] sm:$0xff]
    %v1203 = vld [vmem:[#allocation4 + $0x68] sm:$0xff]
    %v1204 = vld [vmem:[#allocation4 + $0x70] sm:$0xff]
    %v1205 = vld [vmem:[#allocation4 + $0x78] sm:$0xff]
    %1206 = vadd.xlane.f32.xlu0 %v1190
    %v1207 = vpop.xlane.xlu0 %1206
    %1208 = vadd.xlane.f32.xlu0 %v1191
    %v1209 = vpop.xlane.xlu0 %1208
    %1210 = vadd.xlane.f32.xlu0 %v1192
    %v1211 = vpop.xlane.xlu0 %1210
    %1212 = vadd.xlane.f32.xlu0 %v1193
    %v1213 = vpop.xlane.xlu0 %1212
    %1214 = vadd.xlane.f32.xlu0 %v1194
    %v1215 = vpop.xlane.xlu0 %1214
    %1216 = vadd.xlane.f32.xlu0 %v1195
    %v1217 = vpop.xlane.xlu0 %1216
    %1218 = vadd.xlane.f32.xlu0 %v1196
    %v1219 = vpop.xlane.xlu0 %1218
    %1220 = vadd.xlane.f32.xlu0 %v1197
    %v1221 = vpop.xlane.xlu0 %1220
    %1222 = vadd.xlane.f32.xlu0 %v1198
    %v1223 = vpop.xlane.xlu0 %1222
    %1224 = vadd.xlane.f32.xlu0 %v1199
    %v1225 = vpop.xlane.xlu0 %1224
    %1226 = vadd.xlane.f32.xlu0 %v1200
    %v1227 = vpop.xlane.xlu0 %1226
    %1228 = vadd.xlane.f32.xlu0 %v1201
    %v1229 = vpop.xlane.xlu0 %1228
    %1230 = vadd.xlane.f32.xlu0 %v1202
    %v1231 = vpop.xlane.xlu0 %1230
    %1232 = vadd.xlane.f32.xlu0 %v1203
    %v1233 = vpop.xlane.xlu0 %1232
    %1234 = vadd.xlane.f32.xlu0 %v1204
    %v1235 = vpop.xlane.xlu0 %1234
    %1236 = vadd.xlane.f32.xlu0 %v1205
    %v1237 = vpop.xlane.xlu0 %1236
    %v1238 = vadd.f32 %v1190, %v1191
    %v1239 = vadd.f32 %v1238, %v1192
    %v1240 = vadd.f32 %v1239, %v1193
    %v1241 = vadd.f32 %v1240, %v1194
    %v1242 = vadd.f32 %v1241, %v1195
    %v1243 = vadd.f32 %v1242, %v1196
    %v1244 = vadd.f32 %v1243, %v1197
    %v1245 = vadd.f32 %v1244, %v1198
    %v1246 = vadd.f32 %v1245, %v1199
    %v1247 = vadd.f32 %v1246, %v1200
    %v1248 = vadd.f32 %v1247, %v1201
    %v1249 = vadd.f32 %v1248, %v1202
    %v1250 = vadd.f32 %v1249, %v1203
    %v1251 = vadd.f32 %v1250, %v1204
    %v1252 = vadd.f32 %v1251, %v1205
    %v1253 = vrot.slane %v1252, 4
    %v1254 = vadd.f32 %v1252, %v1253
    %v1255 = vrot.slane %v1254, 2
    %v1256 = vadd.f32 %v1254, %v1255
    %v1257 = vrot.slane %v1256, 1
    %v1258 = vadd.f32 %v1256, %v1257
    %vm1259 = vcmp.gt.f32.partialorder %v1207, 0.0
    %vm1260 = vcmp.gt.f32.partialorder %v1209, 0.0
    %vm1261 = vcmp.gt.f32.partialorder %v1211, 0.0
    %vm1262 = vcmp.gt.f32.partialorder %v1213, 0.0
    %vm1263 = vcmp.gt.f32.partialorder %v1215, 0.0
    %vm1264 = vcmp.gt.f32.partialorder %v1217, 0.0
    %vm1265 = vcmp.gt.f32.partialorder %v1219, 0.0
    %vm1266 = vcmp.gt.f32.partialorder %v1221, 0.0
    %vm1267 = vcmp.gt.f32.partialorder %v1223, 0.0
    %vm1268 = vcmp.gt.f32.partialorder %v1225, 0.0
    %vm1269 = vcmp.gt.f32.partialorder %v1227, 0.0
    %vm1270 = vcmp.gt.f32.partialorder %v1229, 0.0
    %vm1271 = vcmp.gt.f32.partialorder %v1231, 0.0
    %vm1272 = vcmp.gt.f32.partialorder %v1233, 0.0
    %vm1273 = vcmp.gt.f32.partialorder %v1235, 0.0
    %vm1274 = vcmp.gt.f32.partialorder %v1237, 0.0
    %v1275 = vmax.f32 %v1207, 1e-12
    %v1276 = vmax.f32 %v1209, 1e-12
    %v1277 = vmax.f32 %v1211, 1e-12
    %v1278 = vmax.f32 %v1213, 1e-12
    %v1279 = vmax.f32 %v1215, 1e-12
    %v1280 = vmax.f32 %v1217, 1e-12
    %v1281 = vmax.f32 %v1219, 1e-12
    %v1282 = vmax.f32 %v1221, 1e-12
    %v1283 = vmax.f32 %v1223, 1e-12
    %v1284 = vmax.f32 %v1225, 1e-12
    %v1285 = vmax.f32 %v1227, 1e-12
    %v1286 = vmax.f32 %v1229, 1e-12
    %v1287 = vmax.f32 %v1231, 1e-12
    %v1288 = vmax.f32 %v1233, 1e-12
    %v1289 = vmax.f32 %v1235, 1e-12
    %v1290 = vmax.f32 %v1237, 1e-12
    %v1291 = vrsqrt.pop %v1275
    %v1292 = vrsqrt.pop %v1276
    %v1293 = vrsqrt.pop %v1277
    %v1294 = vrsqrt.pop %v1278
    %v1295 = vrsqrt.pop %v1279
    %v1296 = vrsqrt.pop %v1280
    %v1297 = vrsqrt.pop %v1281
    %v1298 = vrsqrt.pop %v1282
    %v1299 = vrsqrt.pop %v1283
    %v1300 = vrsqrt.pop %v1284
    %v1301 = vrsqrt.pop %v1285
    %v1302 = vrsqrt.pop %v1286
    %v1303 = vrsqrt.pop %v1287
    %v1304 = vrsqrt.pop %v1288
    %v1305 = vrsqrt.pop %v1289
    %v1306 = vrsqrt.pop %v1290
    %v1307 = vsel %vm1259, %v1291, 0.0
    %v1308 = vsel %vm1260, %v1292, 0.0
    %v1309 = vsel %vm1261, %v1293, 0.0
    %v1310 = vsel %vm1262, %v1294, 0.0
    %v1311 = vsel %vm1263, %v1295, 0.0
    %v1312 = vsel %vm1264, %v1296, 0.0
    %v1313 = vsel %vm1265, %v1297, 0.0
    %v1314 = vsel %vm1266, %v1298, 0.0
    %v1315 = vsel %vm1267, %v1299, 0.0
    %v1316 = vsel %vm1268, %v1300, 0.0
    %v1317 = vsel %vm1269, %v1301, 0.0
    %v1318 = vsel %vm1270, %v1302, 0.0
    %v1319 = vsel %vm1271, %v1303, 0.0
    %v1320 = vsel %vm1272, %v1304, 0.0
    %v1321 = vsel %vm1273, %v1305, 0.0
    %v1322 = vsel %vm1274, %v1306, 0.0
    %vm1323 = vcmp.gt.f32.partialorder %v1258, 0.0
    %v1324 = vmax.f32 %v1258, 1e-12
    %v1325 = vrsqrt.pop %v1324
    %v1326 = vsel %vm1323, %v1325, 0.0
    %v1327 = vmul.f32 %v1190, %v1307
    %v1328 = vmul.f32 %v1191, %v1308
    %v1329 = vmul.f32 %v1192, %v1309
    %v1330 = vmul.f32 %v1193, %v1310
    %v1331 = vmul.f32 %v1194, %v1311
    %v1332 = vmul.f32 %v1195, %v1312
    %v1333 = vmul.f32 %v1196, %v1313
    %v1334 = vmul.f32 %v1197, %v1314
    %v1335 = vmul.f32 %v1198, %v1315
    %v1336 = vmul.f32 %v1199, %v1316
    %v1337 = vmul.f32 %v1200, %v1317
    %v1338 = vmul.f32 %v1201, %v1318
    %v1339 = vmul.f32 %v1202, %v1319
    %v1340 = vmul.f32 %v1203, %v1320
    %v1341 = vmul.f32 %v1204, %v1321
    %v1342 = vmul.f32 %v1205, %v1322
    %v1343 = vmul.f32 %v1327, %v1326
    %v1344 = vmul.f32 %v1328, %v1326
    %v1345 = vmul.f32 %v1329, %v1326
    %v1346 = vmul.f32 %v1330, %v1326
    %v1347 = vmul.f32 %v1331, %v1326
    %v1348 = vmul.f32 %v1332, %v1326
    %v1349 = vmul.f32 %v1333, %v1326
    %v1350 = vmul.f32 %v1334, %v1326
    %v1351 = vmul.f32 %v1335, %v1326
    %v1352 = vmul.f32 %v1336, %v1326
    %v1353 = vmul.f32 %v1337, %v1326
    %v1354 = vmul.f32 %v1338, %v1326
    %v1355 = vmul.f32 %v1339, %v1326
    %v1356 = vmul.f32 %v1340, %v1326
    %v1357 = vmul.f32 %v1341, %v1326
    %v1358 = vmul.f32 %v1342, %v1326
    %v1359 = vpack.c.bf16 %v1344, %v1343
    %v1360 = vpack.c.bf16 %v1346, %v1345
    %v1361 = vpack.c.bf16 %v1348, %v1347
    %v1362 = vpack.c.bf16 %v1350, %v1349
    %v1363 = vpack.c.bf16 %v1352, %v1351
    %v1364 = vpack.c.bf16 %v1354, %v1353
    %v1365 = vpack.c.bf16 %v1356, %v1355
    %v1366 = vpack.c.bf16 %v1358, %v1357
    %v1367 = vpack.c.bf16 %v36, %v35
    %v1368 = vpack.c.bf16 %v38, %v37
    %v1369 = vpack.c.bf16 %v40, %v39
    %v1370 = vpack.c.bf16 %v42, %v41
    %v1371 = vpack.c.bf16 %v44, %v43
    %v1372 = vpack.c.bf16 %v46, %v45
    %v1373 = vpack.c.bf16 %v48, %v47
    %v1374 = vpack.c.bf16 %v50, %v49
    %v1375 = vld [vmem:[%s4] sm:$0xff]
    %v1376 = vld [vmem:[%s4 + $0x8] sm:$0xff]
    %v1377 = vld [vmem:[%s4 + $0x10] sm:$0xff]
    %v1378 = vld [vmem:[%s4 + $0x18] sm:$0xff]
    %v1379 = vld [vmem:[%s4 + $0x20] sm:$0xff]
    %v1380 = vld [vmem:[%s4 + $0x28] sm:$0xff]
    %v1381 = vld [vmem:[%s4 + $0x30] sm:$0xff]
    %v1382 = vld [vmem:[%s4 + $0x38] sm:$0xff]
    %v1383 = vpack.c.bf16 %v1376, %v1375
    %v1384 = vpack.c.bf16 %v1378, %v1377
    %v1385 = vpack.c.bf16 %v1380, %v1379
    %v1386 = vpack.c.bf16 %v1382, %v1381
    %v1388 = vsel %vm516, %v1367, 0
    %v1391 = vsel %vm516, %v1368, 0
    %v1394 = vsel %vm516, %v1369, 0
    %v1397 = vsel %vm516, %v1370, 0
    %v1400 = vsel %vm516, %v1371, 0
    %v1403 = vsel %vm516, %v1372, 0
    %v1406 = vsel %vm516, %v1373, 0
    %v1409 = vsel %vm516, %v1374, 0
    %1411 = vmatprep.subr.bf16.mxu0 0
    %1412 = vmatpush1.bf16.msra.mxu0 %v1383
    %1413 = vmatprep.subr.bf16.mxu0 0
    %1414 = vmatpush1.bf16.msra.mxu0 %v1384
    %1415 = vmatprep.subr.bf16.mxu0 0
    %1416 = vmatpush1.bf16.msra.mxu0 %v1385
    %1417 = vmatprep.subr.bf16.mxu0 0
    %1418 = vmatpush1.bf16.msra.mxu0 %v1386
    %1419 = vmatprep.subr.bf16.mxu0 0
    %1420 = vmatpush1.bf16.msra.mxu0 0
    %1421 = vmatprep.subr.bf16.mxu0 0
    %1422 = vmatpush1.bf16.msra.mxu0 0
    %1423 = vmatprep.subr.bf16.mxu0 0
    %1424 = vmatpush1.bf16.msra.mxu0 0
    %1425 = vmatprep.subr.bf16.mxu0 0
    %1426 = vmatpush1.bf16.msra.mxu0 0
    %1427 = vmatprep.subr.bf16.mxu0 0
    %1428 = vmatpush1.bf16.msra.mxu0 0
    %1429 = vmatprep.subr.bf16.mxu0 0
    %1430 = vmatpush1.bf16.msra.mxu0 0
    %1431 = vmatprep.subr.bf16.mxu0 0
    %1432 = vmatpush1.bf16.msra.mxu0 0
    %1433 = vmatprep.subr.bf16.mxu0 0
    %1434 = vmatpush1.bf16.msra.mxu0 0
    %1435 = vmatprep.subr.bf16.mxu0 0
    %1436 = vmatpush1.bf16.msra.mxu0 0
    %1437 = vmatprep.subr.bf16.mxu0 0
    %1438 = vmatpush1.bf16.msra.mxu0 0
    %1439 = vmatprep.subr.bf16.mxu0 0
    %1440 = vmatpush1.bf16.msra.mxu0 0
    %1441 = vmatprep.subr.bf16.mxu0 0
    %1442 = vmatpush1.bf16.msra.mxu0 0
    %1443 = vmatprep.mubr.bf16.mxu0 0
    %1444 = vmatmul.mubr.bf16.gmra.mrb[0].mxu0 %v1388
    %v1445 = vpop.f32.mrb[0].mxu0
    %v1446 = vadd.f32 0.0, %v1445
    %v1447 = vpop.f32.mrb[0].mxu0
    %v1448 = vpop.f32.mrb[0].mxu0
    %v1449 = vadd.f32 0.0, %v1448
    %v1450 = vpop.f32.mrb[0].mxu0
    %1451 = vmatprep.mubr.bf16.mxu0 0
    %1452 = vmatmul.mubr.bf16.gmra.mrb[0].mxu0 %v1391
    %v1453 = vpop.f32.mrb[0].mxu0
    %v1454 = vadd.f32 0.0, %v1453
    %v1455 = vpop.f32.mrb[0].mxu0
    %v1456 = vpop.f32.mrb[0].mxu0
    %v1457 = vadd.f32 0.0, %v1456
    %v1458 = vpop.f32.mrb[0].mxu0
    %1459 = vmatprep.mubr.bf16.mxu0 0
    %1460 = vmatmul.mubr.bf16.gmra.mrb[0].mxu0 %v1394
    %v1461 = vpop.f32.mrb[0].mxu0
    %v1462 = vadd.f32 0.0, %v1461
    %v1463 = vpop.f32.mrb[0].mxu0
    %v1464 = vpop.f32.mrb[0].mxu0
    %v1465 = vadd.f32 0.0, %v1464
    %v1466 = vpop.f32.mrb[0].mxu0
    %1467 = vmatprep.mubr.bf16.mxu0 0
    %1468 = vmatmul.mubr.bf16.gmra.mrb[0].mxu0 %v1397
    %v1469 = vpop.f32.mrb[0].mxu0
    %v1470 = vadd.f32 0.0, %v1469
    %v1471 = vpop.f32.mrb[0].mxu0
    %v1472 = vpop.f32.mrb[0].mxu0
    %v1473 = vadd.f32 0.0, %v1472
    %v1474 = vpop.f32.mrb[0].mxu0
    %1475 = vmatprep.mubr.bf16.mxu0 0
    %1476 = vmatmul.mubr.bf16.gmra.mrb[0].mxu0 %v1400
    %v1477 = vpop.f32.mrb[0].mxu0
    %v1478 = vadd.f32 0.0, %v1477
    %v1479 = vpop.f32.mrb[0].mxu0
    %v1480 = vpop.f32.mrb[0].mxu0
    %v1481 = vadd.f32 0.0, %v1480
    %v1482 = vpop.f32.mrb[0].mxu0
    %1483 = vmatprep.mubr.bf16.mxu0 0
    %1484 = vmatmul.mubr.bf16.gmra.mrb[0].mxu0 %v1403
    %v1485 = vpop.f32.mrb[0].mxu0
    %v1486 = vadd.f32 0.0, %v1485
    %v1487 = vpop.f32.mrb[0].mxu0
    %v1488 = vpop.f32.mrb[0].mxu0
    %v1489 = vadd.f32 0.0, %v1488
    %v1490 = vpop.f32.mrb[0].mxu0
    %1491 = vmatprep.mubr.bf16.mxu0 0
    %1492 = vmatmul.mubr.bf16.gmra.mrb[0].mxu0 %v1406
    %v1493 = vpop.f32.mrb[0].mxu0
    %v1494 = vadd.f32 0.0, %v1493
    %v1495 = vpop.f32.mrb[0].mxu0
    %v1496 = vpop.f32.mrb[0].mxu0
    %v1497 = vadd.f32 0.0, %v1496
    %v1498 = vpop.f32.mrb[0].mxu0
    %1499 = vmatprep.mubr.bf16.mxu0 0
    %1500 = vmatmul.mubr.bf16.gmra.mrb[0].mxu0 %v1409
    %v1501 = vpop.f32.mrb[0].mxu0
    %v1502 = vadd.f32 0.0, %v1501
    %v1503 = vpop.f32.mrb[0].mxu0
    %v1504 = vpop.f32.mrb[0].mxu0
    %v1505 = vadd.f32 0.0, %v1504
    %v1506 = vpop.f32.mrb[0].mxu0
    %1507 = vdwg.mxu0
    %v1508 = vpack.c.bf16 %v1449, %v1446
    %v1509 = vpack.c.bf16 %v1457, %v1454
    %v1510 = vpack.c.bf16 %v1465, %v1462
    %v1511 = vpack.c.bf16 %v1473, %v1470
    %v1512 = vpack.c.bf16 %v1481, %v1478
    %v1513 = vpack.c.bf16 %v1489, %v1486
    %v1514 = vpack.c.bf16 %v1497, %v1494
    %v1515 = vpack.c.bf16 %v1505, %v1502
    %v1516 = vld [vmem:[%s5] sm:$0x1]
    %v1518 = vlaneseq
    %v1519 = vshrl.u32 %v1518, 7
    %v1520 = vsub.s32 0, %v1519
    %v1521 = vrot.slane %v1516, %v1520
    %1523 = vmatprep.subr.bf16.mxu0 0
    %1524 = vmatpush1.bf16.msra.mxu0 %v1508
    %1525 = vmatprep.subr.bf16.mxu0 0
    %1526 = vmatpush1.bf16.msra.mxu0 %v1509
    %1527 = vmatprep.subr.bf16.mxu0 0
    %1528 = vmatpush1.bf16.msra.mxu0 %v1510
    %1529 = vmatprep.subr.bf16.mxu0 0
    %1530 = vmatpush1.bf16.msra.mxu0 %v1511
    %1531 = vmatprep.subr.bf16.mxu0 0
    %1532 = vmatpush1.bf16.msra.mxu0 %v1512
    %1533 = vmatprep.subr.bf16.mxu0 0
    %1534 = vmatpush1.bf16.msra.mxu0 %v1513
    %1535 = vmatprep.subr.bf16.mxu0 0
    %1536 = vmatpush1.bf16.msra.mxu0 %v1514
    %1537 = vmatprep.subr.bf16.mxu0 0
    %1538 = vmatpush1.bf16.msra.mxu0 %v1515
    %1539 = vmatprep.subr.bf16.mxu0 0
    %1540 = vmatpush1.bf16.msra.mxu0 0
    %1541 = vmatprep.subr.bf16.mxu0 0
    %1542 = vmatpush1.bf16.msra.mxu0 0
    %1543 = vmatprep.subr.bf16.mxu0 0
    %1544 = vmatpush1.bf16.msra.mxu0 0
    %1545 = vmatprep.subr.bf16.mxu0 0
    %1546 = vmatpush1.bf16.msra.mxu0 0
    %1547 = vmatprep.subr.bf16.mxu0 0
    %1548 = vmatpush1.bf16.msra.mxu0 0
    %1549 = vmatprep.subr.bf16.mxu0 0
    %1550 = vmatpush1.bf16.msra.mxu0 0
    %1551 = vmatprep.subr.bf16.mxu0 0
    %1552 = vmatpush1.bf16.msra.mxu0 0
    %1553 = vmatprep.subr.bf16.mxu0 0
    %1554 = vmatpush1.bf16.msra.mxu0 0
    %1555 = vmatprep.mubr.bf16.mxu0 0
    %1556 = vmatmul.mubr.bf16.gmra.mrb[0].mxu0 %v1359
    %v1557 = vpop.f32.mrb[0].mxu0
    %v1558 = vadd.f32 %v1521, %v1557
    %v1559 = vpop.f32.mrb[0].mxu0
    %v1560 = vpop.f32.mrb[0].mxu0
    %v1561 = vadd.f32 %v1521, %v1560
    %v1562 = vpop.f32.mrb[0].mxu0
    %1563 = vmatprep.mubr.bf16.mxu0 0
    %1564 = vmatmul.mubr.bf16.gmra.mrb[0].mxu0 %v1360
    %v1565 = vpop.f32.mrb[0].mxu0
    %v1566 = vadd.f32 %v1521, %v1565
    %v1567 = vpop.f32.mrb[0].mxu0
    %v1568 = vpop.f32.mrb[0].mxu0
    %v1569 = vadd.f32 %v1521, %v1568
    %v1570 = vpop.f32.mrb[0].mxu0
    %1571 = vmatprep.mubr.bf16.mxu0 0
    %1572 = vmatmul.mubr.bf16.gmra.mrb[0].mxu0 %v1361
    %v1573 = vpop.f32.mrb[0].mxu0
    %v1574 = vadd.f32 %v1521, %v1573
    %v1575 = vpop.f32.mrb[0].mxu0
    %v1576 = vpop.f32.mrb[0].mxu0
    %v1577 = vadd.f32 %v1521, %v1576
    %v1578 = vpop.f32.mrb[0].mxu0
    %1579 = vmatprep.mubr.bf16.mxu0 0
    %1580 = vmatmul.mubr.bf16.gmra.mrb[0].mxu0 %v1362
    %v1581 = vpop.f32.mrb[0].mxu0
    %v1582 = vadd.f32 %v1521, %v1581
    %v1583 = vpop.f32.mrb[0].mxu0
    %v1584 = vpop.f32.mrb[0].mxu0
    %v1585 = vadd.f32 %v1521, %v1584
    %v1586 = vpop.f32.mrb[0].mxu0
    %1587 = vmatprep.mubr.bf16.mxu0 0
    %1588 = vmatmul.mubr.bf16.gmra.mrb[0].mxu0 %v1363
    %v1589 = vpop.f32.mrb[0].mxu0
    %v1590 = vadd.f32 %v1521, %v1589
    %v1591 = vpop.f32.mrb[0].mxu0
    %v1592 = vpop.f32.mrb[0].mxu0
    %v1593 = vadd.f32 %v1521, %v1592
    %v1594 = vpop.f32.mrb[0].mxu0
    %1595 = vmatprep.mubr.bf16.mxu0 0
    %1596 = vmatmul.mubr.bf16.gmra.mrb[0].mxu0 %v1364
    %v1597 = vpop.f32.mrb[0].mxu0
    %v1598 = vadd.f32 %v1521, %v1597
    %v1599 = vpop.f32.mrb[0].mxu0
    %v1600 = vpop.f32.mrb[0].mxu0
    %v1601 = vadd.f32 %v1521, %v1600
    %v1602 = vpop.f32.mrb[0].mxu0
    %1603 = vmatprep.mubr.bf16.mxu0 0
    %1604 = vmatmul.mubr.bf16.gmra.mrb[0].mxu0 %v1365
    %v1605 = vpop.f32.mrb[0].mxu0
    %v1606 = vadd.f32 %v1521, %v1605
    %v1607 = vpop.f32.mrb[0].mxu0
    %v1608 = vpop.f32.mrb[0].mxu0
    %v1609 = vadd.f32 %v1521, %v1608
    %v1610 = vpop.f32.mrb[0].mxu0
    %1611 = vmatprep.mubr.bf16.mxu0 0
    %1612 = vmatmul.mubr.bf16.gmra.mrb[0].mxu0 %v1366
    %v1613 = vpop.f32.mrb[0].mxu0
    %v1614 = vadd.f32 %v1521, %v1613
    %v1615 = vpop.f32.mrb[0].mxu0
    %v1616 = vpop.f32.mrb[0].mxu0
    %v1617 = vadd.f32 %v1521, %v1616
    %v1618 = vpop.f32.mrb[0].mxu0
    %1619 = vdwg.mxu0
    %v1620 = vmax.f32 %v1558, 0.0
    %v1621 = vmax.f32 %v1561, 0.0
    %v1622 = vmax.f32 %v1566, 0.0
    %v1623 = vmax.f32 %v1569, 0.0
    %v1624 = vmax.f32 %v1574, 0.0
    %v1625 = vmax.f32 %v1577, 0.0
    %v1626 = vmax.f32 %v1582, 0.0
    %v1627 = vmax.f32 %v1585, 0.0
    %v1628 = vmax.f32 %v1590, 0.0
    %v1629 = vmax.f32 %v1593, 0.0
    %v1630 = vmax.f32 %v1598, 0.0
    %v1631 = vmax.f32 %v1601, 0.0
    %v1632 = vmax.f32 %v1606, 0.0
    %v1633 = vmax.f32 %v1609, 0.0
    %v1634 = vmax.f32 %v1614, 0.0
    %v1635 = vmax.f32 %v1617, 0.0
    %v1636 = vpack.c.bf16 %v1621, %v1620
    %v1637 = vpack.c.bf16 %v1623, %v1622
    %v1638 = vpack.c.bf16 %v1625, %v1624
    %v1639 = vpack.c.bf16 %v1627, %v1626
    %v1640 = vpack.c.bf16 %v1629, %v1628
    %v1641 = vpack.c.bf16 %v1631, %v1630
    %v1642 = vpack.c.bf16 %v1633, %v1632
    %v1643 = vpack.c.bf16 %v1635, %v1634
    %v1644 = vld [vmem:[%s6] sm:$0xff]
    %v1645 = vld [vmem:[%s6 + $0x8] sm:$0xff]
    %v1646 = vld [vmem:[%s6 + $0x10] sm:$0xff]
    %v1647 = vld [vmem:[%s6 + $0x18] sm:$0xff]
    %v1648 = vld [vmem:[%s6 + $0x20] sm:$0xff]
    %v1649 = vld [vmem:[%s6 + $0x28] sm:$0xff]
    %v1650 = vld [vmem:[%s6 + $0x30] sm:$0xff]
    %v1651 = vld [vmem:[%s6 + $0x38] sm:$0xff]
    %v1652 = vld [vmem:[%s6 + $0x40] sm:$0xff]
    %v1653 = vld [vmem:[%s6 + $0x48] sm:$0xff]
    %v1654 = vld [vmem:[%s6 + $0x50] sm:$0xff]
    %v1655 = vld [vmem:[%s6 + $0x58] sm:$0xff]
    %v1656 = vld [vmem:[%s6 + $0x60] sm:$0xff]
    %v1657 = vld [vmem:[%s6 + $0x68] sm:$0xff]
    %v1658 = vld [vmem:[%s6 + $0x70] sm:$0xff]
    %v1659 = vld [vmem:[%s6 + $0x78] sm:$0xff]
    %v1660 = vpack.c.bf16 %v1645, %v1644
    %v1661 = vpack.c.bf16 %v1647, %v1646
    %v1662 = vpack.c.bf16 %v1649, %v1648
    %v1663 = vpack.c.bf16 %v1651, %v1650
    %v1664 = vpack.c.bf16 %v1653, %v1652
    %v1665 = vpack.c.bf16 %v1655, %v1654
    %v1666 = vpack.c.bf16 %v1657, %v1656
    %v1667 = vpack.c.bf16 %v1659, %v1658
    %1668 = vmatprep.subr.bf16.mxu0 0
    %1669 = vmatpush1.bf16.msra.mxu0 %v1660
    %1670 = vmatprep.subr.bf16.mxu0 0
    %1671 = vmatpush1.bf16.msra.mxu0 %v1661
    %1672 = vmatprep.subr.bf16.mxu0 0
    %1673 = vmatpush1.bf16.msra.mxu0 %v1662
    %1674 = vmatprep.subr.bf16.mxu0 0
    %1675 = vmatpush1.bf16.msra.mxu0 %v1663
    %1676 = vmatprep.subr.bf16.mxu0 0
    %1677 = vmatpush1.bf16.msra.mxu0 %v1664
    %1678 = vmatprep.subr.bf16.mxu0 0
    %1679 = vmatpush1.bf16.msra.mxu0 %v1665
    %1680 = vmatprep.subr.bf16.mxu0 0
    %1681 = vmatpush1.bf16.msra.mxu0 %v1666
    %1682 = vmatprep.subr.bf16.mxu0 0
    %1683 = vmatpush1.bf16.msra.mxu0 %v1667
    %1684 = vmatprep.subr.bf16.mxu0 0
    %1685 = vmatpush1.bf16.msra.mxu0 0
    %1686 = vmatprep.subr.bf16.mxu0 0
    %1687 = vmatpush1.bf16.msra.mxu0 0
    %1688 = vmatprep.subr.bf16.mxu0 0
    %1689 = vmatpush1.bf16.msra.mxu0 0
    %1690 = vmatprep.subr.bf16.mxu0 0
    %1691 = vmatpush1.bf16.msra.mxu0 0
    %1692 = vmatprep.subr.bf16.mxu0 0
    %1693 = vmatpush1.bf16.msra.mxu0 0
    %1694 = vmatprep.subr.bf16.mxu0 0
    %1695 = vmatpush1.bf16.msra.mxu0 0
    %1696 = vmatprep.subr.bf16.mxu0 0
    %1697 = vmatpush1.bf16.msra.mxu0 0
    %1698 = vmatprep.subr.bf16.mxu0 0
    %1699 = vmatpush1.bf16.msra.mxu0 0
    %1700 = vmatprep.mubr.bf16.mxu0 0
    %1701 = vmatmul.mubr.bf16.gmra.mrb[0].mxu0 %v1636
    %v1702 = vpop.f32.mrb[0].mxu0
    %v1703 = vadd.f32 0.0, %v1702
    %v1704 = vpop.f32.mrb[0].mxu0
    %v1705 = vpop.f32.mrb[0].mxu0
    %v1706 = vadd.f32 0.0, %v1705
    %v1707 = vpop.f32.mrb[0].mxu0
    %1708 = vmatprep.mubr.bf16.mxu0 0
    %1709 = vmatmul.mubr.bf16.gmra.mrb[0].mxu0 %v1637
    %v1710 = vpop.f32.mrb[0].mxu0
    %v1711 = vadd.f32 0.0, %v1710
    %v1712 = vpop.f32.mrb[0].mxu0
    %v1713 = vpop.f32.mrb[0].mxu0
    %v1714 = vadd.f32 0.0, %v1713
    %v1715 = vpop.f32.mrb[0].mxu0
    %1716 = vmatprep.mubr.bf16.mxu0 0
    %1717 = vmatmul.mubr.bf16.gmra.mrb[0].mxu0 %v1638
    %v1718 = vpop.f32.mrb[0].mxu0
    %v1719 = vadd.f32 0.0, %v1718
    %v1720 = vpop.f32.mrb[0].mxu0
    %v1721 = vpop.f32.mrb[0].mxu0
    %v1722 = vadd.f32 0.0, %v1721
    %v1723 = vpop.f32.mrb[0].mxu0
    %1724 = vmatprep.mubr.bf16.mxu0 0
    %1725 = vmatmul.mubr.bf16.gmra.mrb[0].mxu0 %v1639
    %v1726 = vpop.f32.mrb[0].mxu0
    %v1727 = vadd.f32 0.0, %v1726
    %v1728 = vpop.f32.mrb[0].mxu0
    %v1729 = vpop.f32.mrb[0].mxu0
    %v1730 = vadd.f32 0.0, %v1729
    %v1731 = vpop.f32.mrb[0].mxu0
    %1732 = vmatprep.mubr.bf16.mxu0 0
    %1733 = vmatmul.mubr.bf16.gmra.mrb[0].mxu0 %v1640
    %v1734 = vpop.f32.mrb[0].mxu0
    %v1735 = vadd.f32 0.0, %v1734
    %v1736 = vpop.f32.mrb[0].mxu0
    %v1737 = vpop.f32.mrb[0].mxu0
    %v1738 = vadd.f32 0.0, %v1737
    %v1739 = vpop.f32.mrb[0].mxu0
    %1740 = vmatprep.mubr.bf16.mxu0 0
    %1741 = vmatmul.mubr.bf16.gmra.mrb[0].mxu0 %v1641
    %v1742 = vpop.f32.mrb[0].mxu0
    %v1743 = vadd.f32 0.0, %v1742
    %v1744 = vpop.f32.mrb[0].mxu0
    %v1745 = vpop.f32.mrb[0].mxu0
    %v1746 = vadd.f32 0.0, %v1745
    %v1747 = vpop.f32.mrb[0].mxu0
    %1748 = vmatprep.mubr.bf16.mxu0 0
    %1749 = vmatmul.mubr.bf16.gmra.mrb[0].mxu0 %v1642
    %v1750 = vpop.f32.mrb[0].mxu0
    %v1751 = vadd.f32 0.0, %v1750
    %v1752 = vpop.f32.mrb[0].mxu0
    %v1753 = vpop.f32.mrb[0].mxu0
    %v1754 = vadd.f32 0.0, %v1753
    %v1755 = vpop.f32.mrb[0].mxu0
    %1756 = vmatprep.mubr.bf16.mxu0 0
    %1757 = vmatmul.mubr.bf16.gmra.mrb[0].mxu0 %v1643
    %v1758 = vpop.f32.mrb[0].mxu0
    %v1759 = vadd.f32 0.0, %v1758
    %v1760 = vpop.f32.mrb[0].mxu0
    %v1761 = vpop.f32.mrb[0].mxu0
    %v1762 = vadd.f32 0.0, %v1761
    %v1763 = vpop.f32.mrb[0].mxu0
    %1764 = vdwg.mxu0
    %v1765 = vpack.c.bf16 %v1706, %v1703
    %v1766 = vpack.c.bf16 %v1714, %v1711
    %v1767 = vpack.c.bf16 %v1722, %v1719
    %v1768 = vpack.c.bf16 %v1730, %v1727
    %v1769 = vpack.c.bf16 %v1738, %v1735
    %v1770 = vpack.c.bf16 %v1746, %v1743
    %v1771 = vpack.c.bf16 %v1754, %v1751
    %v1772 = vpack.c.bf16 %v1762, %v1759
    %v1773 = vld [vmem:[%s7] sm:$0x1]
    %v1775 = vlaneseq
    %v1776 = vshrl.u32 %v1775, 7
    %v1777 = vsub.s32 0, %v1776
    %v1778 = vrot.slane %v1773, %v1777
    %1780 = vmatprep.subr.bf16.mxu0 0
    %1781 = vmatpush1.bf16.msra.mxu0 %v1765
    %1782 = vmatprep.subr.bf16.mxu0 0
    %1783 = vmatpush1.bf16.msra.mxu0 %v1766
    %1784 = vmatprep.subr.bf16.mxu0 0
    %1785 = vmatpush1.bf16.msra.mxu0 %v1767
    %1786 = vmatprep.subr.bf16.mxu0 0
    %1787 = vmatpush1.bf16.msra.mxu0 %v1768
    %1788 = vmatprep.subr.bf16.mxu0 0
    %1789 = vmatpush1.bf16.msra.mxu0 %v1769
    %1790 = vmatprep.subr.bf16.mxu0 0
    %1791 = vmatpush1.bf16.msra.mxu0 %v1770
    %1792 = vmatprep.subr.bf16.mxu0 0
    %1793 = vmatpush1.bf16.msra.mxu0 %v1771
    %1794 = vmatprep.subr.bf16.mxu0 0
    %1795 = vmatpush1.bf16.msra.mxu0 %v1772
    %1796 = vmatprep.subr.bf16.mxu0 0
    %1797 = vmatpush1.bf16.msra.mxu0 0
    %1798 = vmatprep.subr.bf16.mxu0 0
    %1799 = vmatpush1.bf16.msra.mxu0 0
    %1800 = vmatprep.subr.bf16.mxu0 0
    %1801 = vmatpush1.bf16.msra.mxu0 0
    %1802 = vmatprep.subr.bf16.mxu0 0
    %1803 = vmatpush1.bf16.msra.mxu0 0
    %1804 = vmatprep.subr.bf16.mxu0 0
    %1805 = vmatpush1.bf16.msra.mxu0 0
    %1806 = vmatprep.subr.bf16.mxu0 0
    %1807 = vmatpush1.bf16.msra.mxu0 0
    %1808 = vmatprep.subr.bf16.mxu0 0
    %1809 = vmatpush1.bf16.msra.mxu0 0
    %1810 = vmatprep.subr.bf16.mxu0 0
    %1811 = vmatpush1.bf16.msra.mxu0 0
    %1812 = vmatprep.mubr.bf16.mxu0 0
    %1813 = vmatmul.mubr.bf16.gmra.mrb[0].mxu0 %v1359
    %v1814 = vpop.f32.mrb[0].mxu0
    %v1815 = vadd.f32 %v1778, %v1814
    %v1816 = vpop.f32.mrb[0].mxu0
    %v1817 = vpop.f32.mrb[0].mxu0
    %v1818 = vadd.f32 %v1778, %v1817
    %v1819 = vpop.f32.mrb[0].mxu0
    %1820 = vmatprep.mubr.bf16.mxu0 0
    %1821 = vmatmul.mubr.bf16.gmra.mrb[0].mxu0 %v1360
    %v1822 = vpop.f32.mrb[0].mxu0
    %v1823 = vadd.f32 %v1778, %v1822
    %v1824 = vpop.f32.mrb[0].mxu0
    %v1825 = vpop.f32.mrb[0].mxu0
    %v1826 = vadd.f32 %v1778, %v1825
    %v1827 = vpop.f32.mrb[0].mxu0
    %1828 = vmatprep.mubr.bf16.mxu0 0
    %1829 = vmatmul.mubr.bf16.gmra.mrb[0].mxu0 %v1361
    %v1830 = vpop.f32.mrb[0].mxu0
    %v1831 = vadd.f32 %v1778, %v1830
    %v1832 = vpop.f32.mrb[0].mxu0
    %v1833 = vpop.f32.mrb[0].mxu0
    %v1834 = vadd.f32 %v1778, %v1833
    %v1835 = vpop.f32.mrb[0].mxu0
    %1836 = vmatprep.mubr.bf16.mxu0 0
    %1837 = vmatmul.mubr.bf16.gmra.mrb[0].mxu0 %v1362
    %v1838 = vpop.f32.mrb[0].mxu0
    %v1839 = vadd.f32 %v1778, %v1838
    %v1840 = vpop.f32.mrb[0].mxu0
    %v1841 = vpop.f32.mrb[0].mxu0
    %v1842 = vadd.f32 %v1778, %v1841
    %v1843 = vpop.f32.mrb[0].mxu0
    %1844 = vmatprep.mubr.bf16.mxu0 0
    %1845 = vmatmul.mubr.bf16.gmra.mrb[0].mxu0 %v1363
    %v1846 = vpop.f32.mrb[0].mxu0
    %v1847 = vadd.f32 %v1778, %v1846
    %v1848 = vpop.f32.mrb[0].mxu0
    %v1849 = vpop.f32.mrb[0].mxu0
    %v1850 = vadd.f32 %v1778, %v1849
    %v1851 = vpop.f32.mrb[0].mxu0
    %1852 = vmatprep.mubr.bf16.mxu0 0
    %1853 = vmatmul.mubr.bf16.gmra.mrb[0].mxu0 %v1364
    %v1854 = vpop.f32.mrb[0].mxu0
    %v1855 = vadd.f32 %v1778, %v1854
    %v1856 = vpop.f32.mrb[0].mxu0
    %v1857 = vpop.f32.mrb[0].mxu0
    %v1858 = vadd.f32 %v1778, %v1857
    %v1859 = vpop.f32.mrb[0].mxu0
    %1860 = vmatprep.mubr.bf16.mxu0 0
    %1861 = vmatmul.mubr.bf16.gmra.mrb[0].mxu0 %v1365
    %v1862 = vpop.f32.mrb[0].mxu0
    %v1863 = vadd.f32 %v1778, %v1862
    %v1864 = vpop.f32.mrb[0].mxu0
    %v1865 = vpop.f32.mrb[0].mxu0
    %v1866 = vadd.f32 %v1778, %v1865
    %v1867 = vpop.f32.mrb[0].mxu0
    %1868 = vmatprep.mubr.bf16.mxu0 0
    %1869 = vmatmul.mubr.bf16.gmra.mrb[0].mxu0 %v1366
    %v1870 = vpop.f32.mrb[0].mxu0
    %v1871 = vadd.f32 %v1778, %v1870
    %v1872 = vpop.f32.mrb[0].mxu0
    %v1873 = vpop.f32.mrb[0].mxu0
    %v1874 = vadd.f32 %v1778, %v1873
    %v1875 = vpop.f32.mrb[0].mxu0
    %1876 = vdwg.mxu0
    %1877 = vst [vmem:[%s8] sm:$0xff] %v1815
    %1878 = vst [vmem:[%s8 + $0x8] sm:$0xff] %v1818
    %1879 = vst [vmem:[%s8 + $0x10] sm:$0xff] %v1823
    %1880 = vst [vmem:[%s8 + $0x18] sm:$0xff] %v1826
    %1881 = vst [vmem:[%s8 + $0x20] sm:$0xff] %v1831
    %1882 = vst [vmem:[%s8 + $0x28] sm:$0xff] %v1834
    %1883 = vst [vmem:[%s8 + $0x30] sm:$0xff] %v1839
    %1884 = vst [vmem:[%s8 + $0x38] sm:$0xff] %v1842
    %1885 = vst [vmem:[%s8 + $0x40] sm:$0xff] %v1847
    %1886 = vst [vmem:[%s8 + $0x48] sm:$0xff] %v1850
    %1887 = vst [vmem:[%s8 + $0x50] sm:$0xff] %v1855
    %1888 = vst [vmem:[%s8 + $0x58] sm:$0xff] %v1858
    %1889 = vst [vmem:[%s8 + $0x60] sm:$0xff] %v1863
    %1890 = vst [vmem:[%s8 + $0x68] sm:$0xff] %v1866
    %1891 = vst [vmem:[%s8 + $0x70] sm:$0xff] %v1871
    %1892 = vst [vmem:[%s8 + $0x78] sm:$0xff] %v1874
    // Predicated region
    $region34: #{grcn_forward.1} parent=1 // pred_check
      _
    $region35: #{grcn_forward.1} parent=1 // pred_check_branch
      %1894 = sbr.rel (0) target = $region37
    $region36: #{grcn_forward.1} parent=1 // pred_region
      _
    $region37: #{grcn_forward.1} parent=1 // pred_fallthru
      _
    // Predicated region
    $region38: #{grcn_forward.1} parent=1 // pred_check
      _
    $region39: #{grcn_forward.1} parent=1 // pred_check_branch
      %1896 = sbr.rel (0) target = $region41
    $region40: #{grcn_forward.1} parent=1 // pred_region
      %s1898 = ssub.s32 2048, 2048
      %1899 = vsyncadd [#allocation3], %s1898
      %s1900 = sshll.u32 [#allocation2], 4
      %s1901 = int_to_ptr.vmem [resolvable:$true] %s1900
      %1906 = dma.vmem_to_hbm [thread:$0]  %s1901, 2048, %s9, [#allocation3], 128, 128, 8
    $region41: #{grcn_forward.1} parent=1 // pred_fallthru
      _
    // Predicated region
    $region42: #{grcn_forward.1} parent=1 // pred_check
      _
    $region43: #{grcn_forward.1} parent=1 // pred_check_branch
      %1908 = sbr.rel (0) target = $region45
    $region44: #{grcn_forward.1} parent=1 // pred_region
      %s1910 = ssub.s32 2048, 2048
      %1911 = vsyncadd [#allocation5], %s1910
      %s1912 = sshll.u32 [#allocation4], 4
      %s1913 = int_to_ptr.vmem [resolvable:$true] %s1912
      %1918 = dma.vmem_to_hbm [thread:$0]  %s1913, 2048, %s10, [#allocation5], 128, 128, 8
    $region45: #{grcn_forward.1} parent=1 // pred_fallthru
      _
    // Predicated region
    $region46: #{grcn_forward.1} parent=1 // pred_check
      _
    $region47: #{grcn_forward.1} parent=1 // pred_check_branch
      %1920 = sbr.rel (0) target = $region49
    $region48: #{grcn_forward.1} parent=1 // pred_region
      _
    $region49: #{grcn_forward.1} parent=1 // pred_fallthru
      _
    // Predicated region
    $region50: #{grcn_forward.1} parent=1 // pred_check
      _
    $region51: #{grcn_forward.1} parent=1 // pred_check_branch
      %1922 = sbr.rel (0) target = $region53
    $region52: #{grcn_forward.1} parent=1 // pred_region
      %1923 = dma.done [#allocation3], 2048
    $region53: #{grcn_forward.1} parent=1 // pred_fallthru
      _
    // Predicated region
    $region54: #{grcn_forward.1} parent=1 // pred_check
      _
    $region55: #{grcn_forward.1} parent=1 // pred_check_branch
      %1925 = sbr.rel (0) target = $region57
    $region56: #{grcn_forward.1} parent=1 // pred_region
      %1926 = dma.done [#allocation5], 2048
    $region57: #{grcn_forward.1} parent=1 // pred_fallthru
      _
    %1927 = vsyncpa [#allocation3], 1
    %1928 = vsyncpa [#allocation5], 1

</llo_original>
